<compile_context>
chip_gen: v7x
topology: tpu7x:2x2x1
jax: 0.10.0
libtpu: 0.0.40
codegen_flags: <defaults>
</compile_context>

<pallas_src>
import functools

import jax
import jax.numpy as jnp
from jax import lax
from jax.experimental import pallas as pl
from jax.experimental.pallas import tpu as pltpu

LANE = 128


def _round_up(x, m):
    return (x + m - 1) // m * m


# ----------------------------------------------------------------------------
# Pallas kernel: one batch tile (Bt, L, D) per grid step.
# ----------------------------------------------------------------------------
def _aim_kernel(num_heads, head_dim, head_dim_pad, compute_dtype,
                x_ref,      # (Bt, L, D)    input block (f32)
                wqkv_ref,   # (D, 3*Dp)     fused in-proj weight, head-major + lane-padded
                bqkv_ref,   # (1, 3*Dp)     fused in-proj bias (f32)
                woa_ref,    # (1, Dp)       folded out_proj @ linear_alpha weight (f32)
                boa_ref,    # (1, 1)        folded bias scalar (SMEM)
                out_ref):   # (Bt, 1, L)    output block, L on the lane axis
    x = x_ref[...]                                   # (Bt, L, D) float32
    Bt, L, D = x.shape
    Dp = num_heads * head_dim_pad
    scale = 1.0 / jnp.sqrt(jnp.float32(head_dim))    # scale uses the TRUE head dim

    # ---- gradient-norm branch (XLU roll + iota mask; row 0 zeroed before max)
    diff = x - pltpu.roll(x, shift=1, axis=1)        # diff[:, l] = x[l] - x[l-1]
    gn = jnp.sqrt(jnp.sum(diff * diff, axis=-1, keepdims=True))      # (Bt, L, 1)
    l_idx = lax.broadcasted_iota(jnp.int32, (Bt, L, 1), 1)
    gn = jnp.where(l_idx == 0, jnp.float32(0.0), gn)                 # left-pad 0
    gn = gn / (jnp.max(gn, axis=1, keepdims=True) + 1e-8)            # exact divide

    # ---- fused QKV projection: one MXU matmul over the whole batch tile -----
    xf = x.reshape(Bt * L, D).astype(compute_dtype)
    qkv = jnp.dot(xf, wqkv_ref[...].astype(compute_dtype),
                  preferred_element_type=jnp.float32)                # (Bt*L, 3Dp)
    qkv = qkv + bqkv_ref[...]
    qkv3 = qkv.reshape(Bt, L, 3 * Dp)

    woa = woa_ref[...]                                               # (1, Dp)

    # ---- multi-head attention, out-proj folded into the alpha score ----------
    # Heads are statically unrolled (small H here); all slices are 128-aligned
    # static views thanks to the head-major / lane-padded weight layout.
    # TODO(synk): for H >= 8 / production L, move heads to lax.fori_loop or a
    # grid axis and flash-tile the K/V length to bound live ranges and VMEM.
    score = jnp.zeros((Bt, L, 1), jnp.float32)
    for h in range(num_heads):
        lo = h * head_dim_pad                        # static multiple of 128
        q = qkv3[:, :, lo:lo + head_dim_pad].astype(compute_dtype)
        k = qkv3[:, :, Dp + lo:Dp + lo + head_dim_pad].astype(compute_dtype)
        v = qkv3[:, :, 2 * Dp + lo:2 * Dp + lo + head_dim_pad].astype(compute_dtype)

        s = jnp.einsum("bld,bmd->blm", q, k,
                       preferred_element_type=jnp.float32) * scale   # (Bt, L, L)
        s = s - jnp.max(s, axis=-1, keepdims=True)
        p = jnp.exp(s)
        denom = jnp.sum(p, axis=-1, keepdims=True)                   # (Bt, L, 1)

        # Unnormalized PV matmul; normalization deferred to one divide per row.
        o = jnp.einsum("blm,bmd->bld", p.astype(compute_dtype), v,
                       preferred_element_type=jnp.float32)           # (Bt, L, dhp)
        contrib = jnp.sum(o * woa[:, lo:lo + head_dim_pad],
                          axis=-1, keepdims=True)                    # (Bt, L, 1)
        score = score + contrib / denom

    score = score + boa_ref[0, 0]
    alpha = jax.nn.sigmoid(gn * score)                               # (Bt, L, 1)
    # Lane-dense store: put L on the 128-lane axis (single tiny relayout).
    out_ref[...] = alpha.reshape(Bt, 1, L)


# ----------------------------------------------------------------------------
# Wrapper
# ----------------------------------------------------------------------------
def adaptive_importance_mask(Ei, params, num_heads, batch_tile=None,
                             compute_dtype=jnp.float32):
    B, L, D = Ei.shape
    assert D % num_heads == 0
    dh = D // num_heads
    dh_pad = _round_up(dh, LANE)          # lane-align per-head slices (exact)
    Dp = num_heads * dh_pad

    # ---- host-side weight fusion / reordering (trace time, reused each step) --
    def head_major_pad(w, b):
        wp = jnp.pad(w.reshape(D, num_heads, dh),
                     ((0, 0), (0, 0), (0, dh_pad - dh))).reshape(D, Dp)
        bp = jnp.pad(b.reshape(1, num_heads, dh),
                     ((0, 0), (0, 0), (0, dh_pad - dh))).reshape(1, Dp)
        return wp, bp

    wq_p, bq_p = head_major_pad(params["wq"], params["bq"])
    wk_p, bk_p = head_major_pad(params["wk"], params["bk"])
    wv_p, bv_p = head_major_pad(params["wv"], params["bv"])
    wqkv = jnp.concatenate([wq_p, wk_p, wv_p], axis=1).astype(compute_dtype)
    bqkv = jnp.concatenate([bq_p, bk_p, bv_p], axis=1)               # f32

    # Fold the out-projection into linear_alpha (algebraically exact).
    woa_full = params["wo"] @ params["wa"]                            # (D, 1)
    boa = params["bo"] @ params["wa"] + params["ba"]                  # (1, 1)
    woa = jnp.pad(woa_full[:, 0].reshape(num_heads, dh),
                  ((0, 0), (0, dh_pad - dh))).reshape(1, Dp)          # (1, Dp)

    # ---- batch tile: aim for >= 2 grid steps (pipelining / megacore) ----------
    if batch_tile is None:
        target_steps = 4 if B >= 4 else max(B, 1)
        Bt = max(1, B // target_steps)
        while B % Bt:
            Bt -= 1
    else:
        Bt = batch_tile
    assert B % Bt == 0

    # ---- explicit scoped-VMEM limit from the actual buffers -------------------
    w_bytes = (wqkv.size * wqkv.dtype.itemsize + (bqkv.size + woa.size) * 4) * 2
    x_bytes = Bt * L * D * 4 * 2
    qkv_bytes = Bt * L * 3 * Dp * 4
    attn_bytes = Bt * L * L * 4 * 3 + Bt * L * dh_pad * 4 * 2
    out_bytes = Bt * L * 4 * 2
    est = int((w_bytes + x_bytes + qkv_bytes + attn_bytes + out_bytes) * 1.5)
    vmem_limit = int(min(max(est + (4 << 20), 32 << 20), 56 << 20))

    kernel = functools.partial(_aim_kernel, num_heads, dh, dh_pad, compute_dtype)

    out = pl.pallas_call(
        kernel,
        out_shape=jax.ShapeDtypeStruct((B, 1, L), jnp.float32),
        grid=(B // Bt,),
        in_specs=[
            pl.BlockSpec((Bt, L, D), lambda b: (b, 0, 0)),        # Ei batch tile
            pl.BlockSpec((D, 3 * Dp), lambda b: (0, 0)),          # fused QKV weight
            pl.BlockSpec((1, 3 * Dp), lambda b: (0, 0)),          # fused QKV bias
            pl.BlockSpec((1, Dp), lambda b: (0, 0)),              # folded wo_a row
            pl.BlockSpec(memory_space=pltpu.MemorySpace.SMEM),    # folded bias scalar
        ],
        out_specs=pl.BlockSpec((Bt, 1, L), lambda b: (b, 0, 0)),  # lane-dense out
        compiler_params=pltpu.CompilerParams(
            dimension_semantics=("parallel",),                     # v7x: 2 TCs
            vmem_limit_bytes=vmem_limit),
    )(Ei, wqkv, bqkv, woa, boa)
    return out.reshape(B, L)


# ----------------------------------------------------------------------------
# Pure-JAX reference (mirrors PyTorch nn.MultiheadAttention + forward).
# ----------------------------------------------------------------------------
def reference(Ei, params, num_heads):
    B, L, D = Ei.shape
    dh = D // num_heads

    grad = Ei[:, 1:, :] - Ei[:, :-1, :]
    gn = jnp.sqrt(jnp.sum(grad * grad, axis=-1))
    gn = jnp.pad(gn, ((0, 0), (1, 0)))
    gn = gn / (jnp.max(gn, axis=1, keepdims=True) + 1e-8)

    q = Ei @ params["wq"] + params["bq"]
    k = Ei @ params["wk"] + params["bk"]
    v = Ei @ params["wv"] + params["bv"]

    def split(t):  # (B, L, D) -> (B, H, L, dh)
        return t.reshape(B, L, num_heads, dh).transpose(0, 2, 1, 3)

    qh, kh, vh = split(q), split(k), split(v)
    s = jnp.einsum("bhqd,bhkd->bhqk", qh, kh) / jnp.sqrt(jnp.float32(dh))
    p = jax.nn.softmax(s, axis=-1)
    o = jnp.einsum("bhqk,bhkd->bhqd", p, vh)
    o = o.transpose(0, 2, 1, 3).reshape(B, L, D)
    attn_out = o @ params["wo"] + params["bo"]

    score = (attn_out @ params["wa"] + params["ba"])[..., 0]
    return jax.nn.sigmoid(gn * score)


# ----------------------------------------------------------------------------
# Main
# ----------------------------------------------------------------------------
if __name__ == "__main__":
    B, L, D, H = 2, 8, 32, 4   # batch, seq, d_model, num_heads

    key = jax.random.PRNGKey(0)
    keys = jax.random.split(key, 12)

    # Weights are stored pre-transposed so the kernel applies them as x @ W
    # (equivalent to PyTorch's x @ W^T).
    params = {
        "wq": 0.1 * jax.random.normal(keys[0], (D, D), jnp.float32),
        "wk": 0.1 * jax.random.normal(keys[1], (D, D), jnp.float32),
        "wv": 0.1 * jax.random.normal(keys[2], (D, D), jnp.float32),
        "bq": 0.1 * jax.random.normal(keys[3], (1, D), jnp.float32),
        "bk": 0.1 * jax.random.normal(keys[4], (1, D), jnp.float32),
        "bv": 0.1 * jax.random.normal(keys[5], (1, D), jnp.float32),
        "wo": 0.1 * jax.random.normal(keys[6], (D, D), jnp.float32),
        "bo": 0.1 * jax.random.normal(keys[7], (1, D), jnp.float32),
        "wa": 0.1 * jax.random.normal(keys[8], (D, 1), jnp.float32),
        "ba": 0.1 * jax.random.normal(keys[9], (1, 1), jnp.float32),
    }

    Ei = jax.random.normal(keys[10], (B, L, D), jnp.float32)

    alpha_ref = reference(Ei, params, H)

    # f32 path: strict parity with the PyTorch-equivalent reference.
    alpha = jax.block_until_ready(adaptive_importance_mask(Ei, params, H))
    assert alpha.shape == (B, L)
    assert jnp.allclose(alpha, alpha_ref, atol=1e-5, rtol=1e-5), (
        f"f32 mismatch: max abs err {jnp.max(jnp.abs(alpha - alpha_ref))}")

    # bf16 MXU-feed path (production recommendation): relaxed tolerance.
    alpha_bf16 = jax.block_until_ready(
        adaptive_importance_mask(Ei, params, H, compute_dtype=jnp.bfloat16))
    assert jnp.allclose(alpha_bf16, alpha_ref, atol=5e-2, rtol=5e-2), (
        f"bf16 mismatch: max abs err {jnp.max(jnp.abs(alpha_bf16 - alpha_ref))}")

    print("KERNEL_OK")
</pallas_src>

<mosaic_0001>
module attributes {stable_mosaic.version = 11 : i64} {
  func.func @_aim_kernel(%arg0: i32, %arg1: memref<1x8x32xf32, #tpu.memory_space<vmem>>, %arg2: memref<32x1536xf32, #tpu.memory_space<vmem>>, %arg3: memref<1x1536xf32, #tpu.memory_space<vmem>>, %arg4: memref<1x512xf32, #tpu.memory_space<vmem>>, %arg5: memref<1x1xf32, #tpu.memory_space<smem>>, %arg6: memref<1x1x8xf32, #tpu.memory_space<vmem>>) attributes {dimension_semantics = [#tpu.dimension_semantics<parallel>], iteration_bounds = array<i64: 2>, scalar_prefetch = 0 : i64, scratch_operands = 0 : i64, tpu.core_type = #tpu.core_type<tc>, window_params = [{transform_indices = @transform_0, window_bounds = array<i64: 1, 8, 32>}, {pipeline_mode = #tpu.pipeline_mode<synchronous>, transform_indices = @transform_1, window_bounds = array<i64: 32, 1536>}, {pipeline_mode = #tpu.pipeline_mode<synchronous>, transform_indices = @transform_2, window_bounds = array<i64: 1, 1536>}, {pipeline_mode = #tpu.pipeline_mode<synchronous>, transform_indices = @transform_3, window_bounds = array<i64: 1, 512>}, {transform_indices = @transform_4, window_bounds = array<i64: 1, 1>}, {transform_indices = @transform_5, window_bounds = array<i64: 1, 1, 8>}]} {
    %c0 = arith.constant 0 : index
    %c0_0 = arith.constant 0 : index
    %c0_1 = arith.constant 0 : index
    %0 = vector.load %arg1[%c0, %c0_0, %c0_1] : memref<1x8x32xf32, #tpu.memory_space<vmem>>, vector<1x8x32xf32>
    %cst = arith.constant 8.000000e+00 : f32
    %1 = math.sqrt %cst : f32
    %cst_2 = arith.constant 1.000000e+00 : f32
    %2 = arith.divf %cst_2, %1 : f32
    %c1_i32 = arith.constant 1 : i32
    %3 = tpu.dynamic_rotate %0 by %c1_i32 dim 1 : vector<1x8x32xf32>, i32 -> vector<1x8x32xf32>
    %4 = arith.subf %0, %3 : vector<1x8x32xf32>
    %5 = arith.mulf %4, %4 : vector<1x8x32xf32>
    %cst_3 = arith.constant dense<0.000000e+00> : vector<1x8xf32>
    %6 = vector.multi_reduction <add>, %5, %cst_3 [2] : vector<1x8x32xf32> to vector<1x8xf32>
    %7 = vector.shape_cast %6 : vector<1x8xf32> to vector<1x8x1xf32>
    %8 = math.sqrt %7 : vector<1x8x1xf32>
    %9 = tpu.iota {dimensions = array<i32: 1>} : vector<1x8x1xi32>
    %c0_i32 = arith.constant 0 : i32
    %10 = vector.broadcast %c0_i32 : i32 to vector<1x8x1xi32>
    %11 = arith.cmpi eq, %9, %10 : vector<1x8x1xi32>
    %cst_4 = arith.constant 0.000000e+00 : f32
    %12 = vector.broadcast %cst_4 : f32 to vector<1x8x1xf32>
    %13 = arith.select %11, %12, %8 : vector<1x8x1xi1>, vector<1x8x1xf32>
    %cst_5 = arith.constant dense<0xFF800000> : vector<1x1xf32>
    %14 = vector.multi_reduction <maximumf>, %13, %cst_5 [1] : vector<1x8x1xf32> to vector<1x1xf32>
    %15 = vector.shape_cast %14 : vector<1x1xf32> to vector<1x1x1xf32>
    %cst_6 = arith.constant 9.99999993E-9 : f32
    %16 = vector.broadcast %cst_6 : f32 to vector<1x1x1xf32>
    %17 = arith.addf %15, %16 : vector<1x1x1xf32>
    %18 = vector.broadcast %17 : vector<1x1x1xf32> to vector<1x8x1xf32>
    %19 = arith.divf %13, %18 : vector<1x8x1xf32>
    %20 = vector.shape_cast %0 : vector<1x8x32xf32> to vector<8x32xf32>
    %c0_7 = arith.constant 0 : index
    %c0_8 = arith.constant 0 : index
    %21 = vector.load %arg2[%c0_7, %c0_8] : memref<32x1536xf32, #tpu.memory_space<vmem>>, vector<32x1536xf32>
    %cst_9 = arith.constant dense<0.000000e+00> : vector<8x1536xf32>
    %22 = tpu.matmul %20, %21, %cst_9 {dimension_numbers = #tpu.dot_dimension_numbers<[1], [0], [0], [1], [0, 0, 1, 1], [], []>} : vector<8x32xf32>, vector<32x1536xf32>, vector<8x1536xf32> -> vector<8x1536xf32>
    %c0_10 = arith.constant 0 : index
    %c0_11 = arith.constant 0 : index
    %23 = vector.load %arg3[%c0_10, %c0_11] : memref<1x1536xf32, #tpu.memory_space<vmem>>, vector<1x1536xf32>
    %24 = vector.broadcast %23 : vector<1x1536xf32> to vector<8x1536xf32>
    %25 = arith.addf %22, %24 : vector<8x1536xf32>
    %26 = vector.shape_cast %25 : vector<8x1536xf32> to vector<1x8x1536xf32>
    %c0_12 = arith.constant 0 : index
    %c0_13 = arith.constant 0 : index
    %27 = vector.load %arg4[%c0_12, %c0_13] : memref<1x512xf32, #tpu.memory_space<vmem>>, vector<1x512xf32>
    %cst_14 = arith.constant 0.000000e+00 : f32
    %28 = vector.broadcast %cst_14 : f32 to vector<1x8x1xf32>
    %29 = vector.extract_strided_slice %26 {offsets = [0, 0, 0], sizes = [1, 8, 128], strides = [1, 1, 1]} : vector<1x8x1536xf32> to vector<1x8x128xf32>
    %30 = vector.extract_strided_slice %26 {offsets = [0, 0, 512], sizes = [1, 8, 128], strides = [1, 1, 1]} : vector<1x8x1536xf32> to vector<1x8x128xf32>
    %31 = vector.extract_strided_slice %26 {offsets = [0, 0, 1024], sizes = [1, 8, 128], strides = [1, 1, 1]} : vector<1x8x1536xf32> to vector<1x8x128xf32>
    "tpu.trace_start"() <{level = 10 : i32, message = "bld,bmd->blm"}> : () -> ()
    %cst_15 = arith.constant dense<0.000000e+00> : vector<1x8x8xf32>
    %32 = tpu.matmul %29, %30, %cst_15 {dimension_numbers = #tpu.dot_dimension_numbers<[2], [2], [1], [1], [0, 0, 0, 1, 1, 1], [0], [0]>} : vector<1x8x128xf32>, vector<1x8x128xf32>, vector<1x8x8xf32> -> vector<1x8x8xf32>
    "tpu.trace_stop"() : () -> ()
    %33 = vector.broadcast %2 : f32 to vector<1x8x8xf32>
    %34 = arith.mulf %32, %33 : vector<1x8x8xf32>
    %cst_16 = arith.constant dense<0xFF800000> : vector<1x8xf32>
    %35 = vector.multi_reduction <maximumf>, %34, %cst_16 [2] : vector<1x8x8xf32> to vector<1x8xf32>
    %36 = vector.shape_cast %35 : vector<1x8xf32> to vector<1x8x1xf32>
    %37 = vector.broadcast %36 : vector<1x8x1xf32> to vector<1x8x8xf32>
    %38 = arith.subf %34, %37 : vector<1x8x8xf32>
    %39 = math.exp %38 : vector<1x8x8xf32>
    %cst_17 = arith.constant dense<0.000000e+00> : vector<1x8xf32>
    %40 = vector.multi_reduction <add>, %39, %cst_17 [2] : vector<1x8x8xf32> to vector<1x8xf32>
    %41 = vector.shape_cast %40 : vector<1x8xf32> to vector<1x8x1xf32>
    "tpu.trace_start"() <{level = 10 : i32, message = "blm,bmd->bld"}> : () -> ()
    %cst_18 = arith.constant dense<0.000000e+00> : vector<1x8x128xf32>
    %42 = tpu.matmul %39, %31, %cst_18 {dimension_numbers = #tpu.dot_dimension_numbers<[2], [1], [1], [2], [0, 0, 0, 1, 1, 2], [0], [0]>} : vector<1x8x8xf32>, vector<1x8x128xf32>, vector<1x8x128xf32> -> vector<1x8x128xf32>
    "tpu.trace_stop"() : () -> ()
    %43 = vector.extract_strided_slice %27 {offsets = [0, 0], sizes = [1, 128], strides = [1, 1]} : vector<1x512xf32> to vector<1x128xf32>
    %44 = vector.shape_cast %43 : vector<1x128xf32> to vector<1x1x128xf32>
    %45 = vector.broadcast %44 : vector<1x1x128xf32> to vector<1x8x128xf32>
    %46 = arith.mulf %42, %45 : vector<1x8x128xf32>
    %cst_19 = arith.constant dense<0.000000e+00> : vector<1x8xf32>
    %47 = vector.multi_reduction <add>, %46, %cst_19 [2] : vector<1x8x128xf32> to vector<1x8xf32>
    %48 = vector.shape_cast %47 : vector<1x8xf32> to vector<1x8x1xf32>
    %49 = arith.divf %48, %41 : vector<1x8x1xf32>
    %50 = arith.addf %28, %49 : vector<1x8x1xf32>
    %51 = vector.extract_strided_slice %26 {offsets = [0, 0, 128], sizes = [1, 8, 128], strides = [1, 1, 1]} : vector<1x8x1536xf32> to vector<1x8x128xf32>
    %52 = vector.extract_strided_slice %26 {offsets = [0, 0, 640], sizes = [1, 8, 128], strides = [1, 1, 1]} : vector<1x8x1536xf32> to vector<1x8x128xf32>
    %53 = vector.extract_strided_slice %26 {offsets = [0, 0, 1152], sizes = [1, 8, 128], strides = [1, 1, 1]} : vector<1x8x1536xf32> to vector<1x8x128xf32>
    "tpu.trace_start"() <{level = 10 : i32, message = "bld,bmd->blm"}> : () -> ()
    %cst_20 = arith.constant dense<0.000000e+00> : vector<1x8x8xf32>
    %54 = tpu.matmul %51, %52, %cst_20 {dimension_numbers = #tpu.dot_dimension_numbers<[2], [2], [1], [1], [0, 0, 0, 1, 1, 1], [0], [0]>} : vector<1x8x128xf32>, vector<1x8x128xf32>, vector<1x8x8xf32> -> vector<1x8x8xf32>
    "tpu.trace_stop"() : () -> ()
    %55 = vector.broadcast %2 : f32 to vector<1x8x8xf32>
    %56 = arith.mulf %54, %55 : vector<1x8x8xf32>
    %cst_21 = arith.constant dense<0xFF800000> : vector<1x8xf32>
    %57 = vector.multi_reduction <maximumf>, %56, %cst_21 [2] : vector<1x8x8xf32> to vector<1x8xf32>
    %58 = vector.shape_cast %57 : vector<1x8xf32> to vector<1x8x1xf32>
    %59 = vector.broadcast %58 : vector<1x8x1xf32> to vector<1x8x8xf32>
    %60 = arith.subf %56, %59 : vector<1x8x8xf32>
    %61 = math.exp %60 : vector<1x8x8xf32>
    %cst_22 = arith.constant dense<0.000000e+00> : vector<1x8xf32>
    %62 = vector.multi_reduction <add>, %61, %cst_22 [2] : vector<1x8x8xf32> to vector<1x8xf32>
    %63 = vector.shape_cast %62 : vector<1x8xf32> to vector<1x8x1xf32>
    "tpu.trace_start"() <{level = 10 : i32, message = "blm,bmd->bld"}> : () -> ()
    %cst_23 = arith.constant dense<0.000000e+00> : vector<1x8x128xf32>
    %64 = tpu.matmul %61, %53, %cst_23 {dimension_numbers = #tpu.dot_dimension_numbers<[2], [1], [1], [2], [0, 0, 0, 1, 1, 2], [0], [0]>} : vector<1x8x8xf32>, vector<1x8x128xf32>, vector<1x8x128xf32> -> vector<1x8x128xf32>
    "tpu.trace_stop"() : () -> ()
    %65 = vector.extract_strided_slice %27 {offsets = [0, 128], sizes = [1, 128], strides = [1, 1]} : vector<1x512xf32> to vector<1x128xf32>
    %66 = vector.shape_cast %65 : vector<1x128xf32> to vector<1x1x128xf32>
    %67 = vector.broadcast %66 : vector<1x1x128xf32> to vector<1x8x128xf32>
    %68 = arith.mulf %64, %67 : vector<1x8x128xf32>
    %cst_24 = arith.constant dense<0.000000e+00> : vector<1x8xf32>
    %69 = vector.multi_reduction <add>, %68, %cst_24 [2] : vector<1x8x128xf32> to vector<1x8xf32>
    %70 = vector.shape_cast %69 : vector<1x8xf32> to vector<1x8x1xf32>
    %71 = arith.divf %70, %63 : vector<1x8x1xf32>
    %72 = arith.addf %50, %71 : vector<1x8x1xf32>
    %73 = vector.extract_strided_slice %26 {offsets = [0, 0, 256], sizes = [1, 8, 128], strides = [1, 1, 1]} : vector<1x8x1536xf32> to vector<1x8x128xf32>
    %74 = vector.extract_strided_slice %26 {offsets = [0, 0, 768], sizes = [1, 8, 128], strides = [1, 1, 1]} : vector<1x8x1536xf32> to vector<1x8x128xf32>
    %75 = vector.extract_strided_slice %26 {offsets = [0, 0, 1280], sizes = [1, 8, 128], strides = [1, 1, 1]} : vector<1x8x1536xf32> to vector<1x8x128xf32>
    "tpu.trace_start"() <{level = 10 : i32, message = "bld,bmd->blm"}> : () -> ()
    %cst_25 = arith.constant dense<0.000000e+00> : vector<1x8x8xf32>
    %76 = tpu.matmul %73, %74, %cst_25 {dimension_numbers = #tpu.dot_dimension_numbers<[2], [2], [1], [1], [0, 0, 0, 1, 1, 1], [0], [0]>} : vector<1x8x128xf32>, vector<1x8x128xf32>, vector<1x8x8xf32> -> vector<1x8x8xf32>
    "tpu.trace_stop"() : () -> ()
    %77 = vector.broadcast %2 : f32 to vector<1x8x8xf32>
    %78 = arith.mulf %76, %77 : vector<1x8x8xf32>
    %cst_26 = arith.constant dense<0xFF800000> : vector<1x8xf32>
    %79 = vector.multi_reduction <maximumf>, %78, %cst_26 [2] : vector<1x8x8xf32> to vector<1x8xf32>
    %80 = vector.shape_cast %79 : vector<1x8xf32> to vector<1x8x1xf32>
    %81 = vector.broadcast %80 : vector<1x8x1xf32> to vector<1x8x8xf32>
    %82 = arith.subf %78, %81 : vector<1x8x8xf32>
    %83 = math.exp %82 : vector<1x8x8xf32>
    %cst_27 = arith.constant dense<0.000000e+00> : vector<1x8xf32>
    %84 = vector.multi_reduction <add>, %83, %cst_27 [2] : vector<1x8x8xf32> to vector<1x8xf32>
    %85 = vector.shape_cast %84 : vector<1x8xf32> to vector<1x8x1xf32>
    "tpu.trace_start"() <{level = 10 : i32, message = "blm,bmd->bld"}> : () -> ()
    %cst_28 = arith.constant dense<0.000000e+00> : vector<1x8x128xf32>
    %86 = tpu.matmul %83, %75, %cst_28 {dimension_numbers = #tpu.dot_dimension_numbers<[2], [1], [1], [2], [0, 0, 0, 1, 1, 2], [0], [0]>} : vector<1x8x8xf32>, vector<1x8x128xf32>, vector<1x8x128xf32> -> vector<1x8x128xf32>
    "tpu.trace_stop"() : () -> ()
    %87 = vector.extract_strided_slice %27 {offsets = [0, 256], sizes = [1, 128], strides = [1, 1]} : vector<1x512xf32> to vector<1x128xf32>
    %88 = vector.shape_cast %87 : vector<1x128xf32> to vector<1x1x128xf32>
    %89 = vector.broadcast %88 : vector<1x1x128xf32> to vector<1x8x128xf32>
    %90 = arith.mulf %86, %89 : vector<1x8x128xf32>
    %cst_29 = arith.constant dense<0.000000e+00> : vector<1x8xf32>
    %91 = vector.multi_reduction <add>, %90, %cst_29 [2] : vector<1x8x128xf32> to vector<1x8xf32>
    %92 = vector.shape_cast %91 : vector<1x8xf32> to vector<1x8x1xf32>
    %93 = arith.divf %92, %85 : vector<1x8x1xf32>
    %94 = arith.addf %72, %93 : vector<1x8x1xf32>
    %95 = vector.extract_strided_slice %26 {offsets = [0, 0, 384], sizes = [1, 8, 128], strides = [1, 1, 1]} : vector<1x8x1536xf32> to vector<1x8x128xf32>
    %96 = vector.extract_strided_slice %26 {offsets = [0, 0, 896], sizes = [1, 8, 128], strides = [1, 1, 1]} : vector<1x8x1536xf32> to vector<1x8x128xf32>
    %97 = vector.extract_strided_slice %26 {offsets = [0, 0, 1408], sizes = [1, 8, 128], strides = [1, 1, 1]} : vector<1x8x1536xf32> to vector<1x8x128xf32>
    "tpu.trace_start"() <{level = 10 : i32, message = "bld,bmd->blm"}> : () -> ()
    %cst_30 = arith.constant dense<0.000000e+00> : vector<1x8x8xf32>
    %98 = tpu.matmul %95, %96, %cst_30 {dimension_numbers = #tpu.dot_dimension_numbers<[2], [2], [1], [1], [0, 0, 0, 1, 1, 1], [0], [0]>} : vector<1x8x128xf32>, vector<1x8x128xf32>, vector<1x8x8xf32> -> vector<1x8x8xf32>
    "tpu.trace_stop"() : () -> ()
    %99 = vector.broadcast %2 : f32 to vector<1x8x8xf32>
    %100 = arith.mulf %98, %99 : vector<1x8x8xf32>
    %cst_31 = arith.constant dense<0xFF800000> : vector<1x8xf32>
    %101 = vector.multi_reduction <maximumf>, %100, %cst_31 [2] : vector<1x8x8xf32> to vector<1x8xf32>
    %102 = vector.shape_cast %101 : vector<1x8xf32> to vector<1x8x1xf32>
    %103 = vector.broadcast %102 : vector<1x8x1xf32> to vector<1x8x8xf32>
    %104 = arith.subf %100, %103 : vector<1x8x8xf32>
    %105 = math.exp %104 : vector<1x8x8xf32>
    %cst_32 = arith.constant dense<0.000000e+00> : vector<1x8xf32>
    %106 = vector.multi_reduction <add>, %105, %cst_32 [2] : vector<1x8x8xf32> to vector<1x8xf32>
    %107 = vector.shape_cast %106 : vector<1x8xf32> to vector<1x8x1xf32>
    "tpu.trace_start"() <{level = 10 : i32, message = "blm,bmd->bld"}> : () -> ()
    %cst_33 = arith.constant dense<0.000000e+00> : vector<1x8x128xf32>
    %108 = tpu.matmul %105, %97, %cst_33 {dimension_numbers = #tpu.dot_dimension_numbers<[2], [1], [1], [2], [0, 0, 0, 1, 1, 2], [0], [0]>} : vector<1x8x8xf32>, vector<1x8x128xf32>, vector<1x8x128xf32> -> vector<1x8x128xf32>
    "tpu.trace_stop"() : () -> ()
    %109 = vector.extract_strided_slice %27 {offsets = [0, 384], sizes = [1, 128], strides = [1, 1]} : vector<1x512xf32> to vector<1x128xf32>
    %110 = vector.shape_cast %109 : vector<1x128xf32> to vector<1x1x128xf32>
    %111 = vector.broadcast %110 : vector<1x1x128xf32> to vector<1x8x128xf32>
    %112 = arith.mulf %108, %111 : vector<1x8x128xf32>
    %cst_34 = arith.constant dense<0.000000e+00> : vector<1x8xf32>
    %113 = vector.multi_reduction <add>, %112, %cst_34 [2] : vector<1x8x128xf32> to vector<1x8xf32>
    %114 = vector.shape_cast %113 : vector<1x8xf32> to vector<1x8x1xf32>
    %115 = arith.divf %114, %107 : vector<1x8x1xf32>
    %116 = arith.addf %94, %115 : vector<1x8x1xf32>
    %c0_35 = arith.constant 0 : index
    %c0_36 = arith.constant 0 : index
    %117 = memref.load %arg5[%c0_35, %c0_36] : memref<1x1xf32, #tpu.memory_space<smem>>
    %118 = vector.broadcast %117 : f32 to vector<1x8x1xf32>
    %119 = arith.addf %116, %118 : vector<1x8x1xf32>
    %120 = arith.mulf %19, %119 : vector<1x8x1xf32>
    %121 = arith.negf %120 : vector<1x8x1xf32>
    %122 = math.exp %121 : vector<1x8x1xf32>
    %cst_37 = arith.constant 1.000000e+00 : f32
    %123 = vector.broadcast %cst_37 : f32 to vector<1x8x1xf32>
    %124 = arith.addf %123, %122 : vector<1x8x1xf32>
    %125 = arith.divf %123, %124 : vector<1x8x1xf32>
    %126 = vector.shape_cast %125 : vector<1x8x1xf32> to vector<1x1x8xf32>
    %c0_38 = arith.constant 0 : index
    %c0_39 = arith.constant 0 : index
    %c0_40 = arith.constant 0 : index
    %127 = vector.load %arg6[%c0_38, %c0_39, %c0_40] : memref<1x1x8xf32, #tpu.memory_space<vmem>>, vector<1x1x8xf32>
    tpu.vector_store %arg6[%c0_38, %c0_39, %c0_40], %126 {strides = array<i32>} : memref<1x1x8xf32, #tpu.memory_space<vmem>>, vector<1x1x8xf32>,
    return
  }
  func.func @transform_0(%arg0: i32) -> (i32, i32, i32) {
    %c0_i32 = arith.constant 0 : i32
    %c0_i32_0 = arith.constant 0 : i32
    %c0_i32_1 = arith.constant 0 : i32
    return %arg0, %c0_i32, %c0_i32_0 : i32, i32, i32
  }
  func.func @transform_1(%arg0: i32) -> (i32, i32) {
    %c0_i32 = arith.constant 0 : i32
    %c0_i32_0 = arith.constant 0 : i32
    %c0_i32_1 = arith.constant 0 : i32
    return %c0_i32, %c0_i32_0 : i32, i32
  }
  func.func @transform_2(%arg0: i32) -> (i32, i32) {
    %c0_i32 = arith.constant 0 : i32
    %c0_i32_0 = arith.constant 0 : i32
    %c0_i32_1 = arith.constant 0 : i32
    return %c0_i32, %c0_i32_0 : i32, i32
  }
  func.func @transform_3(%arg0: i32) -> (i32, i32) {
    %c0_i32 = arith.constant 0 : i32
    %c0_i32_0 = arith.constant 0 : i32
    %c0_i32_1 = arith.constant 0 : i32
    return %c0_i32, %c0_i32_0 : i32, i32
  }
  func.func @transform_4(%arg0: i32) -> (i32, i32) {
    %c0_i32 = arith.constant 0 : i32
    %c0_i32_0 = arith.constant 0 : i32
    %c0_i32_1 = arith.constant 0 : i32
    return %c0_i32, %c0_i32_0 : i32, i32
  }
  func.func @transform_5(%arg0: i32) -> (i32, i32, i32) {
    %c0_i32 = arith.constant 0 : i32
    %c0_i32_0 = arith.constant 0 : i32
    %c0_i32_1 = arith.constant 0 : i32
    return %arg0, %c0_i32, %c0_i32_0 : i32, i32, i32
  }
}

</mosaic_0001>

<llo_original>
// kernel: tpu_custom_call.1
$region0: #{tpu_custom_call.1}
  #allocation0 [shape = 'u32[]', space=smem, size = 0x4, offset = 0x4, fixed_abs, tag = 'smem constant byte address 0x4 - core index']
  #allocation1 [shape = 'u32[144,128]{1,0:T(1,128)}', space=vmem, size = 0x12000, scoped, tag = 'internal scratch']
  #allocation2 [shape = 'f32[1,1]{1,0:T(1,128)S(6)}', space=smem, size = 0x200, scoped, tag = 'scoped memory for tpu_custom_call.1']
  %s0 = inlined_call_operand.hbm [shape: f32[2,8,32], index: 0, kind: input, shape index: {}]
  %s1 = inlined_call_operand.hbm [shape: f32[32,1536], index: 1, kind: input, shape index: {}]
  %s2 = inlined_call_operand.hbm [shape: f32[1,1536], index: 2, kind: input, shape index: {}]
  %s3 = inlined_call_operand.vmem [shape: f32[1,512], index: 3, kind: input, shape index: {}]
  %s4 = inlined_call_operand.<no memory space> [shape: f32[1,1], index: 4, kind: input, shape index: {}]
  %s5 = inlined_call_operand.hbm [shape: f32[2,1,8], index: 5, kind: output, shape index: {}]
  %s6 = sld [smem:[#allocation0]]
  $region65: #{tpu_custom_call.1} parent=0
    _
  %s8 = ssub.s32 1, %s6
  %s9 = scalar_select 0, %s8, %s6
  %10 = sst [smem:[#allocation2]] %s4
  $region1: #{tpu_custom_call.1} parent=0
    #allocation3 [shape = 'u8[8192]{0}', space=vmem, size = 0x2000, scoped, tag = 'input window, operand 0']
    #allocation4 [shape = 's32[2]{0}', space=sflag, size = 0x8, scoped, tag = 'scoped memory for tpu_custom_call.1']
    #allocation5 [shape = 's32[2]{0}', space=sflag, size = 0x8, scoped, tag = 'scoped memory for tpu_custom_call.1']
    #allocation6 [shape = 'u8[196608]{0}', space=vmem, size = 0x30000, scoped, tag = 'input window, operand 1, single buffered']
    #allocation7 [shape = 's32[1]{0}', space=sflag, size = 0x4, scoped, tag = 'scoped memory for tpu_custom_call.1']
    #allocation8 [shape = 'u8[6144]{0}', space=vmem, size = 0x1800, scoped, tag = 'input window, operand 2, single buffered']
    #allocation9 [shape = 'u8[1024]{0}', space=vmem, size = 0x400, scoped, tag = 'output window, operand 0']
    %11 = vsyncpa [#allocation4], 0
    %s12 = scalar_lea.sflag [#allocation4], 1
    %13 = vsyncpa %s12, 0
    %14 = vsyncpa [#allocation7], 0
    %15 = vsyncpa [#allocation5], 0
    %s16 = scalar_lea.sflag [#allocation5], 1
    %17 = vsyncpa %s16, 0
    loop: start=0, step=1, limit=4
    $region2: #{tpu_custom_call.1} parent=1 // loop_pre_header
      _
    $region3: #{tpu_custom_call.1} parent=1 // loop_header
      %s19 = sphi 0, %s23
      %p20 = scmp.ge.s32.totalorder %s19, 4
      %s29 = sphi 0, %s31
      %s32 = sphi 0, %s29
      %s33 = sphi 0, %s32
      %s49 = sphi 0, %s33
      %s53 = sphi 0, %s53
      %s55 = sphi 0, %s53
      %s56 = sphi 0, %s55
      %s70 = sphi 0, %s56
      %s74 = sphi 0, %s74
      %s76 = sphi 0, %s74
      %s77 = sphi 0, %s76
      %s91 = sphi 0, %s77
      %s95 = sphi 0, %s95
      %s97 = sphi 0, %s95
      %s98 = sphi 0, %s97
      %s112 = sphi 0, %s98
      %s116 = sphi 0, %s116
      %s118 = sphi 0, %s116
      %s119 = sphi 0, %s118
      %s133 = sphi 0, %s119
      %s139 = sphi 0, %s141
      %s142 = sphi 0, %s139
      %s143 = sphi 0, %s142
      %s159 = sphi 0, %s143
    $region4: #{tpu_custom_call.1} parent=1 // loop_header_branch
      %22 = sbr.rel (%p20) target = $region8
    $region5: #{tpu_custom_call.1} parent=1 // loop_body
      %s24 = ssub.s32 %s19, 1
      %s25 = ssub.s32 %s19, 2
      %s26 = sadd.s32 %s19, 1
      %s27 = ssub.s32 %s19, %s26
      %p28 = scmp.eq.s32.totalorder %s27, 0
      %s30 = sadd.s32 %s29, 1
      %s31 = scalar_select %p28, %s29, %s30
      %p34 = pneg %p28
      %p35 = scmp.eq.s32.totalorder %s19, 1
      %p36 = por %p34, %p35
      %p37 = scmp.ne.s32.totalorder %s29, %s32
      %p38 = scmp.eq.s32.totalorder %s19, 0
      %p39 = por %p37, %p38
      %p40 = scmp.ne.s32.totalorder %s29, %s32
      %p41 = scmp.eq.s32.totalorder %s24, 1
      %p42 = por %p40, %p41
      %p43 = scmp.ne.s32.totalorder %s32, %s33
      %p44 = scmp.eq.s32.totalorder %s24, 0
      %p45 = por %p43, %p44
      %p46 = scmp.ne.s32.totalorder %s32, %s33
      %p47 = scmp.eq.s32.totalorder %s25, 1
      %p48 = por %p46, %p47
      %p50 = scmp.ne.s32.totalorder %s33, %s49
      %p51 = scmp.eq.s32.totalorder %s25, 0
      %p52 = por %p50, %p51
      %s54 = sadd.s32 %s53, 1
      %p57 = scmp.eq.s32.totalorder %s19, 1
      %p58 = scmp.ne.s32.totalorder %s53, %s55
      %p59 = scmp.eq.s32.totalorder %s19, 0
      %p60 = por %p58, %p59
      %p61 = scmp.ne.s32.totalorder %s53, %s55
      %p62 = scmp.eq.s32.totalorder %s24, 1
      %p63 = por %p61, %p62
      %p64 = scmp.ne.s32.totalorder %s55, %s56
      %p65 = scmp.eq.s32.totalorder %s24, 0
      %p66 = por %p64, %p65
      %p67 = scmp.ne.s32.totalorder %s55, %s56
      %p68 = scmp.eq.s32.totalorder %s25, 1
      %p69 = por %p67, %p68
      %p71 = scmp.ne.s32.totalorder %s56, %s70
      %p72 = scmp.eq.s32.totalorder %s25, 0
      %p73 = por %p71, %p72
      %s75 = sadd.s32 %s74, 1
      %p78 = scmp.eq.s32.totalorder %s19, 1
      %p79 = scmp.ne.s32.totalorder %s74, %s76
      %p80 = scmp.eq.s32.totalorder %s19, 0
      %p81 = por %p79, %p80
      %p82 = scmp.ne.s32.totalorder %s74, %s76
      %p83 = scmp.eq.s32.totalorder %s24, 1
      %p84 = por %p82, %p83
      %p85 = scmp.ne.s32.totalorder %s76, %s77
      %p86 = scmp.eq.s32.totalorder %s24, 0
      %p87 = por %p85, %p86
      %p88 = scmp.ne.s32.totalorder %s76, %s77
      %p89 = scmp.eq.s32.totalorder %s25, 1
      %p90 = por %p88, %p89
      %p92 = scmp.ne.s32.totalorder %s77, %s91
      %p93 = scmp.eq.s32.totalorder %s25, 0
      %p94 = por %p92, %p93
      %s96 = sadd.s32 %s95, 1
      %p99 = scmp.eq.s32.totalorder %s19, 1
      %p100 = scmp.ne.s32.totalorder %s95, %s97
      %p101 = scmp.eq.s32.totalorder %s19, 0
      %p102 = por %p100, %p101
      %p103 = scmp.ne.s32.totalorder %s95, %s97
      %p104 = scmp.eq.s32.totalorder %s24, 1
      %p105 = por %p103, %p104
      %p106 = scmp.ne.s32.totalorder %s97, %s98
      %p107 = scmp.eq.s32.totalorder %s24, 0
      %p108 = por %p106, %p107
      %p109 = scmp.ne.s32.totalorder %s97, %s98
      %p110 = scmp.eq.s32.totalorder %s25, 1
      %p111 = por %p109, %p110
      %p113 = scmp.ne.s32.totalorder %s98, %s112
      %p114 = scmp.eq.s32.totalorder %s25, 0
      %p115 = por %p113, %p114
      %s117 = sadd.s32 %s116, 1
      %p120 = scmp.eq.s32.totalorder %s19, 1
      %p121 = scmp.ne.s32.totalorder %s116, %s118
      %p122 = scmp.eq.s32.totalorder %s19, 0
      %p123 = por %p121, %p122
      %p124 = scmp.ne.s32.totalorder %s116, %s118
      %p125 = scmp.eq.s32.totalorder %s24, 1
      %p126 = por %p124, %p125
      %p127 = scmp.ne.s32.totalorder %s118, %s119
      %p128 = scmp.eq.s32.totalorder %s24, 0
      %p129 = por %p127, %p128
      %p130 = scmp.ne.s32.totalorder %s118, %s119
      %p131 = scmp.eq.s32.totalorder %s25, 1
      %p132 = por %p130, %p131
      %p134 = scmp.ne.s32.totalorder %s119, %s133
      %p135 = scmp.eq.s32.totalorder %s25, 0
      %p136 = por %p134, %p135
      %s137 = ssub.s32 %s19, %s26
      %p138 = scmp.eq.s32.totalorder %s137, 0
      %s140 = sadd.s32 %s139, 1
      %s141 = scalar_select %p138, %s139, %s140
      %p144 = pneg %p138
      %p145 = scmp.eq.s32.totalorder %s19, 1
      %p146 = por %p144, %p145
      %p147 = scmp.ne.s32.totalorder %s139, %s142
      %p148 = scmp.eq.s32.totalorder %s19, 0
      %p149 = por %p147, %p148
      %p150 = scmp.ne.s32.totalorder %s139, %s142
      %p151 = scmp.eq.s32.totalorder %s24, 1
      %p152 = por %p150, %p151
      %p153 = scmp.ne.s32.totalorder %s142, %s143
      %p154 = scmp.eq.s32.totalorder %s24, 0
      %p155 = por %p153, %p154
      %p156 = scmp.ne.s32.totalorder %s142, %s143
      %p157 = scmp.eq.s32.totalorder %s25, 1
      %p158 = por %p156, %p157
      %p160 = scmp.ne.s32.totalorder %s143, %s159
      %p161 = scmp.eq.s32.totalorder %s25, 0
      %p162 = por %p160, %p161
      %p163 = scmp.le.s32.totalorder 1, %s19
      %p164 = scmp.lt.s32.totalorder %s19, 3
      %p165 = pnand %p163, %p164
      %p166 = pneg %p165
      // Predicated region
      $region9: #{tpu_custom_call.1} parent=5 // pred_check
        _
      $region10: #{tpu_custom_call.1} parent=5 // pred_check_branch
        %168 = sbr.rel (%p165) target = $region12
      $region11: #{tpu_custom_call.1} parent=5 // pred_region
        %s169 = ssub.s32 %s19, 1
        // Predicated region
        $region13: #{tpu_custom_call.1} parent=11 // pred_check
          %p170 = pneg %p66
        $region14: #{tpu_custom_call.1} parent=11 // pred_check_branch
          %172 = sbr.rel (%p170) target = $region16
        $region15: #{tpu_custom_call.1} parent=11 // pred_region
          %s174 = ssub.s32 6144, 6144
          %175 = vsyncadd [#allocation7], %s174
          %s176 = sshll.u32 [#allocation6], 4
          %s177 = int_to_ptr.vmem [resolvable:$true] %s176
          %182 = dma.hbm_to_vmem [thread:$0]  %s1, 6144, %s177, [#allocation7], 1536, 1536, 96
        $region16: #{tpu_custom_call.1} parent=11 // pred_fallthru
          _
        // Predicated region
        $region17: #{tpu_custom_call.1} parent=11 // pred_check
          %p183 = pneg %p87
        $region18: #{tpu_custom_call.1} parent=11 // pred_check_branch
          %185 = sbr.rel (%p183) target = $region20
        $region19: #{tpu_custom_call.1} parent=11 // pred_region
          %s187 = ssub.s32 192, 192
          %188 = vsyncadd [#allocation7], %s187
          %s190 = sshll.u32 [#allocation8], 4
          %s191 = int_to_ptr.vmem [resolvable:$true] %s190
          %193 = dma.hbm_to_vmem [thread:$0]  %s2, 192, %s191, [#allocation7]
        $region20: #{tpu_custom_call.1} parent=11 // pred_fallthru
          _
        // Predicated region
        $region21: #{tpu_custom_call.1} parent=11 // pred_check
          %p194 = pneg %p108
        $region22: #{tpu_custom_call.1} parent=11 // pred_check_branch
          %196 = sbr.rel (%p194) target = $region24
        $region23: #{tpu_custom_call.1} parent=11 // pred_region
          _
        $region24: #{tpu_custom_call.1} parent=11 // pred_fallthru
          _
        // Predicated region
        $region25: #{tpu_custom_call.1} parent=11 // pred_check
          %p197 = pneg %p129
        $region26: #{tpu_custom_call.1} parent=11 // pred_check_branch
          %199 = sbr.rel (%p197) target = $region28
        $region27: #{tpu_custom_call.1} parent=11 // pred_region
          _
        $region28: #{tpu_custom_call.1} parent=11 // pred_fallthru
          _
      $region12: #{tpu_custom_call.1} parent=5 // pred_fallthru
        _
      %p200 = scmp.lt.s32.totalorder %s19, 2
      // Predicated region
      $region29: #{tpu_custom_call.1} parent=5 // pred_check
        %p201 = pneg %p200
      $region30: #{tpu_custom_call.1} parent=5 // pred_check_branch
        %203 = sbr.rel (%p201) target = $region32
      $region31: #{tpu_custom_call.1} parent=5 // pred_region
        // Predicated region
        $region33: #{tpu_custom_call.1} parent=31 // pred_check
          %p204 = pneg %p39
        $region34: #{tpu_custom_call.1} parent=31 // pred_check_branch
          %206 = sbr.rel (%p204) target = $region36
        $region35: #{tpu_custom_call.1} parent=31 // pred_region
          %s207 = sand.u32 %s29, 1
          %s208 = scalar_lea.sflag [#allocation4], %s207
          %s209 = sand.u32 %s29, 1
          %s210 = smul.addr %s209, 8
          %s211 = scalar_lea.vmem [#allocation3], %s210
          %s213 = ssub.s32 128, 128
          %214 = vsyncadd %s208, %s213
          %s215 = smul.addr %s19, 128
          %s216 = scalar_lea.hbm %s0, %s215
          %s218 = sshll.u32 %s211, 4
          %s219 = int_to_ptr.vmem [resolvable:$true] %s218
          %221 = dma.hbm_to_vmem [thread:$0]  %s216, 128, %s219, %s208
        $region36: #{tpu_custom_call.1} parent=31 // pred_fallthru
          _
      $region32: #{tpu_custom_call.1} parent=5 // pred_fallthru
        _
      %p222 = scmp.le.s32.totalorder 1, %s19
      %p223 = scmp.lt.s32.totalorder %s19, 3
      %p224 = pnand %p222, %p223
      %p225 = pneg %p224
      // Predicated region
      $region37: #{tpu_custom_call.1} parent=5 // pred_check
        _
      $region38: #{tpu_custom_call.1} parent=5 // pred_check_branch
        %227 = sbr.rel (%p224) target = $region40
      $region39: #{tpu_custom_call.1} parent=5 // pred_region
        %s228 = ssub.s32 %s19, 1
        %s229 = sand.u32 %s32, 1
        %s230 = scalar_lea.sflag [#allocation4], %s229
        %s231 = sand.u32 %s32, 1
        %s232 = smul.addr %s231, 8
        %s233 = scalar_lea.vmem [#allocation3], %s232
        // Predicated region
        $region41: #{tpu_custom_call.1} parent=39 // pred_check
          %p234 = pneg %p45
        $region42: #{tpu_custom_call.1} parent=39 // pred_check_branch
          %236 = sbr.rel (%p234) target = $region44
        $region43: #{tpu_custom_call.1} parent=39 // pred_region
          %237 = dma.done %s230, 128
        $region44: #{tpu_custom_call.1} parent=39 // pred_fallthru
          _
        // Predicated region
        $region45: #{tpu_custom_call.1} parent=39 // pred_check
          %p238 = pneg %p66
        $region46: #{tpu_custom_call.1} parent=39 // pred_check_branch
          %240 = sbr.rel (%p238) target = $region48
        $region47: #{tpu_custom_call.1} parent=39 // pred_region
          %241 = dma.done [#allocation7], 6144
        $region48: #{tpu_custom_call.1} parent=39 // pred_fallthru
          _
        // Predicated region
        $region49: #{tpu_custom_call.1} parent=39 // pred_check
          %p242 = pneg %p87
        $region50: #{tpu_custom_call.1} parent=39 // pred_check_branch
          %244 = sbr.rel (%p242) target = $region52
        $region51: #{tpu_custom_call.1} parent=39 // pred_region
          %245 = dma.done [#allocation7], 192
        $region52: #{tpu_custom_call.1} parent=39 // pred_fallthru
          _
        %s246 = sand.u32 %s32, 1
        %s247 = scalar_lea.sflag [#allocation4], %s246
        %s248 = sand.u32 %s32, 1
        %s249 = smul.addr %s248, 8
        %s250 = scalar_lea.vmem [#allocation3], %s249
        %p251 = pneg %p45
        %p252 = pneg %p42
        %p253 = pneg %p66
        %p254 = pneg %p63
        %p255 = pneg %p87
        %p256 = pneg %p84
        %p257 = pneg %p108
        %p258 = pneg %p105
        %p259 = pneg %p129
        %p260 = pneg %p126
        %p261 = pneg %p155
        %p262 = pneg %p152
        %s263 = sand.u32 %s142, 1
        %s264 = scalar_lea.sflag [#allocation5], %s263
        %s265 = sand.u32 %s142, 1
        %s266 = scalar_lea.vmem [#allocation9], %s265
        %v267 = vld [vmem:[%s233] sm:$0xff]
        %v268 = vrot.slane %v267, 7
        %v269 = vsub.f32 %v267, %v268
        %v270 = vmul.f32 %v269, %v269
        %vm271 = vcmask 261120
        %v272 = vsel %vm271, %v270, 0.0
        %273 = vadd.xlane.f32.xlu0 %v272
        %v274 = vpop.xlane.xlu0 %273
        %v275 = vrsqrt.pop %v274
        %v276 = vmul.f32 %v274, %v275
        %vm277 = vcmp.eq.f32.partialorder %v274, inf
        %v278 = vsel %vm277, %v274, %v276
        %vm279 = vcmp.eq.f32.partialorder %v274, 0.0
        %v280 = vand.u32 %v274, 2147483648
        %v281 = vsel %vm279, %v280, %v278
        %v282 = vlaneseq
        %v283 = vshrl.u32 %v282, 7
        %vm284 = vcmp.eq.s32.totalorder %v283, 0
        %v285 = vsel %vm284, 0.0, %v281
        %v286 = vrot.slane %v285, 4
        %v287 = vmax.f32 %v285, %v286
        %v288 = vrot.slane %v287, 2
        %v289 = vmax.f32 %v287, %v288
        %v290 = vrot.slane %v289, 1
        %v291 = vmax.f32 %v289, %v290
        %v292 = vadd.f32 %v291, 1e-08
        %v293 = vrcp.pop %v292
        %v294 = vmul.f32 %v285, %v293
        %v295 = vld [vmem:[#allocation6] sm:$0xff]
        %v296 = vld [vmem:[#allocation6 + $0x8] sm:$0xff]
        %v297 = vld [vmem:[#allocation6 + $0x10] sm:$0xff]
        %v298 = vld [vmem:[#allocation6 + $0x18] sm:$0xff]
        %v299 = vld [vmem:[#allocation6 + $0x20] sm:$0xff]
        %v300 = vld [vmem:[#allocation6 + $0x28] sm:$0xff]
        %v301 = vld [vmem:[#allocation6 + $0x30] sm:$0xff]
        %v302 = vld [vmem:[#allocation6 + $0x38] sm:$0xff]
        %v303 = vld [vmem:[#allocation6 + $0x40] sm:$0xff]
        %v304 = vld [vmem:[#allocation6 + $0x48] sm:$0xff]
        %v305 = vld [vmem:[#allocation6 + $0x50] sm:$0xff]
        %v306 = vld [vmem:[#allocation6 + $0x58] sm:$0xff]
        %v307 = vld [vmem:[#allocation6 + $0x60] sm:$0xff]
        %v308 = vld [vmem:[#allocation6 + $0x68] sm:$0xff]
        %v309 = vld [vmem:[#allocation6 + $0x70] sm:$0xff]
        %v310 = vld [vmem:[#allocation6 + $0x78] sm:$0xff]
        %v311 = vld [vmem:[#allocation6 + $0x80] sm:$0xff]
        %v312 = vld [vmem:[#allocation6 + $0x88] sm:$0xff]
        %v313 = vld [vmem:[#allocation6 + $0x90] sm:$0xff]
        %v314 = vld [vmem:[#allocation6 + $0x98] sm:$0xff]
        %v315 = vld [vmem:[#allocation6 + $0xa0] sm:$0xff]
        %v316 = vld [vmem:[#allocation6 + $0xa8] sm:$0xff]
        %v317 = vld [vmem:[#allocation6 + $0xb0] sm:$0xff]
        %v318 = vld [vmem:[#allocation6 + $0xb8] sm:$0xff]
        %v319 = vld [vmem:[#allocation6 + $0xc0] sm:$0xff]
        %v320 = vld [vmem:[#allocation6 + $0xc8] sm:$0xff]
        %v321 = vld [vmem:[#allocation6 + $0xd0] sm:$0xff]
        %v322 = vld [vmem:[#allocation6 + $0xd8] sm:$0xff]
        %v323 = vld [vmem:[#allocation6 + $0xe0] sm:$0xff]
        %v324 = vld [vmem:[#allocation6 + $0xe8] sm:$0xff]
        %v325 = vld [vmem:[#allocation6 + $0xf0] sm:$0xff]
        %v326 = vld [vmem:[#allocation6 + $0xf8] sm:$0xff]
        %v327 = vld [vmem:[#allocation6 + $0x100] sm:$0xff]
        %v328 = vld [vmem:[#allocation6 + $0x108] sm:$0xff]
        %v329 = vld [vmem:[#allocation6 + $0x110] sm:$0xff]
        %v330 = vld [vmem:[#allocation6 + $0x118] sm:$0xff]
        %v331 = vld [vmem:[#allocation6 + $0x120] sm:$0xff]
        %v332 = vld [vmem:[#allocation6 + $0x128] sm:$0xff]
        %v333 = vld [vmem:[#allocation6 + $0x130] sm:$0xff]
        %v334 = vld [vmem:[#allocation6 + $0x138] sm:$0xff]
        %v335 = vld [vmem:[#allocation6 + $0x140] sm:$0xff]
        %v336 = vld [vmem:[#allocation6 + $0x148] sm:$0xff]
        %v337 = vld [vmem:[#allocation6 + $0x150] sm:$0xff]
        %v338 = vld [vmem:[#allocation6 + $0x158] sm:$0xff]
        %v339 = vld [vmem:[#allocation6 + $0x160] sm:$0xff]
        %v340 = vld [vmem:[#allocation6 + $0x168] sm:$0xff]
        %v341 = vld [vmem:[#allocation6 + $0x170] sm:$0xff]
        %v342 = vld [vmem:[#allocation6 + $0x178] sm:$0xff]
        %v343 = vld [vmem:[#allocation8] sm:$0xff]
        %v344 = vld [vmem:[#allocation8 + $0x8] sm:$0xf]
        %v347 = vlaneseq
        %v348 = vshrl.u32 %v347, 7
        %v349 = vsub.s32 0, %v348
        %v350 = vrot.slane %v343, %v349
        %v351 = vlaneseq
        %v352 = vshrl.u32 %v351, 7
        %v353 = vsub.s32 1, %v352
        %v354 = vrot.slane %v343, %v353
        %v355 = vlaneseq
        %v356 = vshrl.u32 %v355, 7
        %v357 = vsub.s32 2, %v356
        %v358 = vrot.slane %v343, %v357
        %v359 = vlaneseq
        %v360 = vshrl.u32 %v359, 7
        %v361 = vsub.s32 3, %v360
        %v362 = vrot.slane %v343, %v361
        %v363 = vlaneseq
        %v364 = vshrl.u32 %v363, 7
        %v365 = vsub.s32 4, %v364
        %v366 = vrot.slane %v343, %v365
        %v367 = vlaneseq
        %v368 = vshrl.u32 %v367, 7
        %v369 = vsub.s32 5, %v368
        %v370 = vrot.slane %v343, %v369
        %v371 = vlaneseq
        %v372 = vshrl.u32 %v371, 7
        %v373 = vsub.s32 6, %v372
        %v374 = vrot.slane %v343, %v373
        %v375 = vlaneseq
        %v376 = vshrl.u32 %v375, 7
        %v377 = vsub.s32 7, %v376
        %v378 = vrot.slane %v343, %v377
        %v379 = vlaneseq
        %v380 = vshrl.u32 %v379, 7
        %v381 = vsub.s32 0, %v380
        %v382 = vrot.slane %v344, %v381
        %v383 = vlaneseq
        %v384 = vshrl.u32 %v383, 7
        %v385 = vsub.s32 1, %v384
        %v386 = vrot.slane %v344, %v385
        %v387 = vlaneseq
        %v388 = vshrl.u32 %v387, 7
        %v389 = vsub.s32 2, %v388
        %v390 = vrot.slane %v344, %v389
        %v391 = vlaneseq
        %v392 = vshrl.u32 %v391, 7
        %v393 = vsub.s32 3, %v392
        %v394 = vrot.slane %v344, %v393
        %v408 = vsel %vm271, %v267, 0
        %410 = vmatprep.subr.mxu0 %v296
        %411 = vmatpush1.msra.mxu0 %v295
        %412 = vmatprep.subr.mxu0 %v308
        %413 = vmatpush1.msra.mxu0 %v307
        %414 = vmatprep.subr.mxu0 %v320
        %415 = vmatpush1.msra.mxu0 %v319
        %416 = vmatprep.subr.mxu0 %v332
        %417 = vmatpush1.msra.mxu0 %v331
        %418 = vmatprep.subr.mxu0 0.0
        %419 = vmatpush1.msra.mxu0 0.0
        %420 = vmatprep.subr.mxu0 0.0
        %421 = vmatpush1.msra.mxu0 0.0
        %422 = vmatprep.subr.mxu0 0.0
        %423 = vmatpush1.msra.mxu0 0.0
        %424 = vmatprep.subr.mxu0 0.0
        %425 = vmatpush1.msra.mxu0 0.0
        %426 = vmatprep.subr.mxu0 0.0
        %427 = vmatpush1.msra.mxu0 0.0
        %428 = vmatprep.subr.mxu0 0.0
        %429 = vmatpush1.msra.mxu0 0.0
        %430 = vmatprep.subr.mxu0 0.0
        %431 = vmatpush1.msra.mxu0 0.0
        %432 = vmatprep.subr.mxu0 0.0
        %433 = vmatpush1.msra.mxu0 0.0
        %434 = vmatprep.subr.mxu0 0.0
        %435 = vmatpush1.msra.mxu0 0.0
        %436 = vmatprep.subr.mxu0 0.0
        %437 = vmatpush1.msra.mxu0 0.0
        %438 = vmatprep.subr.mxu0 0.0
        %439 = vmatpush1.msra.mxu0 0.0
        %440 = vmatprep.subr.mxu0 0.0
        %441 = vmatpush1.msra.mxu0 0.0
        %442 = vmatprep.subr.mxu0 0.0
        %443 = vmatpush1.msra.mxu0 0.0
        %444 = vmatprep.subr.mxu0 0.0
        %445 = vmatpush1.msra.mxu0 0.0
        %446 = vmatprep.subr.mxu0 0.0
        %447 = vmatpush1.msra.mxu0 0.0
        %448 = vmatprep.subr.mxu0 0.0
        %449 = vmatpush1.msra.mxu0 0.0
        %450 = vmatprep.subr.mxu0 0.0
        %451 = vmatpush1.msra.mxu0 0.0
        %452 = vmatprep.subr.mxu0 0.0
        %453 = vmatpush1.msra.mxu0 0.0
        %454 = vmatprep.subr.mxu0 0.0
        %455 = vmatpush1.msra.mxu0 0.0
        %456 = vmatprep.subr.mxu0 0.0
        %457 = vmatpush1.msra.mxu0 0.0
        %458 = vmatprep.subr.mxu0 0.0
        %459 = vmatpush1.msra.mxu0 0.0
        %460 = vmatprep.subr.mxu0 0.0
        %461 = vmatpush1.msra.mxu0 0.0
        %462 = vmatprep.subr.mxu0 0.0
        %463 = vmatpush1.msra.mxu0 0.0
        %464 = vmatprep.subr.mxu0 0.0
        %465 = vmatpush1.msra.mxu0 0.0
        %466 = vmatprep.subr.mxu0 0.0
        %467 = vmatpush1.msra.mxu0 0.0
        %468 = vmatprep.subr.mxu0 0.0
        %469 = vmatpush1.msra.mxu0 0.0
        %470 = vmatprep.subr.mxu0 0.0
        %471 = vmatpush1.msra.mxu0 0.0
        %472 = vmatprep.subr.mxu0 0.0
        %473 = vmatpush1.msra.mxu0 0.0
        %474 = vmatprep.mubr.f32.mxu0 0.0
        %475 = vmatmul.mubr.f32.gmra.mrb[0].mxu0 %v408
        %v476 = vpop.f32.mrb[0].mxu0
        %v477 = vadd.f32 %v350, %v476
        %v478 = vpop.f32.mrb[0].mxu0
        %v479 = vadd.f32 %v354, %v478
        %480 = vdwg.mxu0
        %481 = vmatprep.subr.mxu0 %v298
        %482 = vmatpush1.msra.mxu0 %v297
        %483 = vmatprep.subr.mxu0 %v310
        %484 = vmatpush1.msra.mxu0 %v309
        %485 = vmatprep.subr.mxu0 %v322
        %486 = vmatpush1.msra.mxu0 %v321
        %487 = vmatprep.subr.mxu0 %v334
        %488 = vmatpush1.msra.mxu0 %v333
        %489 = vmatprep.subr.mxu0 0.0
        %490 = vmatpush1.msra.mxu0 0.0
        %491 = vmatprep.subr.mxu0 0.0
        %492 = vmatpush1.msra.mxu0 0.0
        %493 = vmatprep.subr.mxu0 0.0
        %494 = vmatpush1.msra.mxu0 0.0
        %495 = vmatprep.subr.mxu0 0.0
        %496 = vmatpush1.msra.mxu0 0.0
        %497 = vmatprep.subr.mxu0 0.0
        %498 = vmatpush1.msra.mxu0 0.0
        %499 = vmatprep.subr.mxu0 0.0
        %500 = vmatpush1.msra.mxu0 0.0
        %501 = vmatprep.subr.mxu0 0.0
        %502 = vmatpush1.msra.mxu0 0.0
        %503 = vmatprep.subr.mxu0 0.0
        %504 = vmatpush1.msra.mxu0 0.0
        %505 = vmatprep.subr.mxu0 0.0
        %506 = vmatpush1.msra.mxu0 0.0
        %507 = vmatprep.subr.mxu0 0.0
        %508 = vmatpush1.msra.mxu0 0.0
        %509 = vmatprep.subr.mxu0 0.0
        %510 = vmatpush1.msra.mxu0 0.0
        %511 = vmatprep.subr.mxu0 0.0
        %512 = vmatpush1.msra.mxu0 0.0
        %513 = vmatprep.subr.mxu0 0.0
        %514 = vmatpush1.msra.mxu0 0.0
        %515 = vmatprep.subr.mxu0 0.0
        %516 = vmatpush1.msra.mxu0 0.0
        %517 = vmatprep.subr.mxu0 0.0
        %518 = vmatpush1.msra.mxu0 0.0
        %519 = vmatprep.subr.mxu0 0.0
        %520 = vmatpush1.msra.mxu0 0.0
        %521 = vmatprep.subr.mxu0 0.0
        %522 = vmatpush1.msra.mxu0 0.0
        %523 = vmatprep.subr.mxu0 0.0
        %524 = vmatpush1.msra.mxu0 0.0
        %525 = vmatprep.subr.mxu0 0.0
        %526 = vmatpush1.msra.mxu0 0.0
        %527 = vmatprep.subr.mxu0 0.0
        %528 = vmatpush1.msra.mxu0 0.0
        %529 = vmatprep.subr.mxu0 0.0
        %530 = vmatpush1.msra.mxu0 0.0
        %531 = vmatprep.subr.mxu0 0.0
        %532 = vmatpush1.msra.mxu0 0.0
        %533 = vmatprep.subr.mxu0 0.0
        %534 = vmatpush1.msra.mxu0 0.0
        %535 = vmatprep.subr.mxu0 0.0
        %536 = vmatpush1.msra.mxu0 0.0
        %537 = vmatprep.subr.mxu0 0.0
        %538 = vmatpush1.msra.mxu0 0.0
        %539 = vmatprep.subr.mxu0 0.0
        %540 = vmatpush1.msra.mxu0 0.0
        %541 = vmatprep.subr.mxu0 0.0
        %542 = vmatpush1.msra.mxu0 0.0
        %543 = vmatprep.subr.mxu0 0.0
        %544 = vmatpush1.msra.mxu0 0.0
        %545 = vmatprep.mubr.f32.mxu0 0.0
        %546 = vmatmul.mubr.f32.gmra.mrb[0].mxu0 %v408
        %v547 = vpop.f32.mrb[0].mxu0
        %v548 = vadd.f32 %v358, %v547
        %v549 = vpop.f32.mrb[0].mxu0
        %v550 = vadd.f32 %v362, %v549
        %551 = vdwg.mxu0
        %552 = vmatprep.subr.mxu0 %v300
        %553 = vmatpush1.msra.mxu0 %v299
        %554 = vmatprep.subr.mxu0 %v312
        %555 = vmatpush1.msra.mxu0 %v311
        %556 = vmatprep.subr.mxu0 %v324
        %557 = vmatpush1.msra.mxu0 %v323
        %558 = vmatprep.subr.mxu0 %v336
        %559 = vmatpush1.msra.mxu0 %v335
        %560 = vmatprep.subr.mxu0 0.0
        %561 = vmatpush1.msra.mxu0 0.0
        %562 = vmatprep.subr.mxu0 0.0
        %563 = vmatpush1.msra.mxu0 0.0
        %564 = vmatprep.subr.mxu0 0.0
        %565 = vmatpush1.msra.mxu0 0.0
        %566 = vmatprep.subr.mxu0 0.0
        %567 = vmatpush1.msra.mxu0 0.0
        %568 = vmatprep.subr.mxu0 0.0
        %569 = vmatpush1.msra.mxu0 0.0
        %570 = vmatprep.subr.mxu0 0.0
        %571 = vmatpush1.msra.mxu0 0.0
        %572 = vmatprep.subr.mxu0 0.0
        %573 = vmatpush1.msra.mxu0 0.0
        %574 = vmatprep.subr.mxu0 0.0
        %575 = vmatpush1.msra.mxu0 0.0
        %576 = vmatprep.subr.mxu0 0.0
        %577 = vmatpush1.msra.mxu0 0.0
        %578 = vmatprep.subr.mxu0 0.0
        %579 = vmatpush1.msra.mxu0 0.0
        %580 = vmatprep.subr.mxu0 0.0
        %581 = vmatpush1.msra.mxu0 0.0
        %582 = vmatprep.subr.mxu0 0.0
        %583 = vmatpush1.msra.mxu0 0.0
        %584 = vmatprep.subr.mxu0 0.0
        %585 = vmatpush1.msra.mxu0 0.0
        %586 = vmatprep.subr.mxu0 0.0
        %587 = vmatpush1.msra.mxu0 0.0
        %588 = vmatprep.subr.mxu0 0.0
        %589 = vmatpush1.msra.mxu0 0.0
        %590 = vmatprep.subr.mxu0 0.0
        %591 = vmatpush1.msra.mxu0 0.0
        %592 = vmatprep.subr.mxu0 0.0
        %593 = vmatpush1.msra.mxu0 0.0
        %594 = vmatprep.subr.mxu0 0.0
        %595 = vmatpush1.msra.mxu0 0.0
        %596 = vmatprep.subr.mxu0 0.0
        %597 = vmatpush1.msra.mxu0 0.0
        %598 = vmatprep.subr.mxu0 0.0
        %599 = vmatpush1.msra.mxu0 0.0
        %600 = vmatprep.subr.mxu0 0.0
        %601 = vmatpush1.msra.mxu0 0.0
        %602 = vmatprep.subr.mxu0 0.0
        %603 = vmatpush1.msra.mxu0 0.0
        %604 = vmatprep.subr.mxu0 0.0
        %605 = vmatpush1.msra.mxu0 0.0
        %606 = vmatprep.subr.mxu0 0.0
        %607 = vmatpush1.msra.mxu0 0.0
        %608 = vmatprep.subr.mxu0 0.0
        %609 = vmatpush1.msra.mxu0 0.0
        %610 = vmatprep.subr.mxu0 0.0
        %611 = vmatpush1.msra.mxu0 0.0
        %612 = vmatprep.subr.mxu0 0.0
        %613 = vmatpush1.msra.mxu0 0.0
        %614 = vmatprep.subr.mxu0 0.0
        %615 = vmatpush1.msra.mxu0 0.0
        %616 = vmatprep.mubr.f32.mxu0 0.0
        %617 = vmatmul.mubr.f32.gmra.mrb[0].mxu0 %v408
        %v618 = vpop.f32.mrb[0].mxu0
        %v619 = vadd.f32 %v366, %v618
        %v620 = vpop.f32.mrb[0].mxu0
        %v621 = vadd.f32 %v370, %v620
        %622 = vdwg.mxu0
        %623 = vmatprep.subr.mxu0 %v302
        %624 = vmatpush1.msra.mxu0 %v301
        %625 = vmatprep.subr.mxu0 %v314
        %626 = vmatpush1.msra.mxu0 %v313
        %627 = vmatprep.subr.mxu0 %v326
        %628 = vmatpush1.msra.mxu0 %v325
        %629 = vmatprep.subr.mxu0 %v338
        %630 = vmatpush1.msra.mxu0 %v337
        %631 = vmatprep.subr.mxu0 0.0
        %632 = vmatpush1.msra.mxu0 0.0
        %633 = vmatprep.subr.mxu0 0.0
        %634 = vmatpush1.msra.mxu0 0.0
        %635 = vmatprep.subr.mxu0 0.0
        %636 = vmatpush1.msra.mxu0 0.0
        %637 = vmatprep.subr.mxu0 0.0
        %638 = vmatpush1.msra.mxu0 0.0
        %639 = vmatprep.subr.mxu0 0.0
        %640 = vmatpush1.msra.mxu0 0.0
        %641 = vmatprep.subr.mxu0 0.0
        %642 = vmatpush1.msra.mxu0 0.0
        %643 = vmatprep.subr.mxu0 0.0
        %644 = vmatpush1.msra.mxu0 0.0
        %645 = vmatprep.subr.mxu0 0.0
        %646 = vmatpush1.msra.mxu0 0.0
        %647 = vmatprep.subr.mxu0 0.0
        %648 = vmatpush1.msra.mxu0 0.0
        %649 = vmatprep.subr.mxu0 0.0
        %650 = vmatpush1.msra.mxu0 0.0
        %651 = vmatprep.subr.mxu0 0.0
        %652 = vmatpush1.msra.mxu0 0.0
        %653 = vmatprep.subr.mxu0 0.0
        %654 = vmatpush1.msra.mxu0 0.0
        %655 = vmatprep.subr.mxu0 0.0
        %656 = vmatpush1.msra.mxu0 0.0
        %657 = vmatprep.subr.mxu0 0.0
        %658 = vmatpush1.msra.mxu0 0.0
        %659 = vmatprep.subr.mxu0 0.0
        %660 = vmatpush1.msra.mxu0 0.0
        %661 = vmatprep.subr.mxu0 0.0
        %662 = vmatpush1.msra.mxu0 0.0
        %663 = vmatprep.subr.mxu0 0.0
        %664 = vmatpush1.msra.mxu0 0.0
        %665 = vmatprep.subr.mxu0 0.0
        %666 = vmatpush1.msra.mxu0 0.0
        %667 = vmatprep.subr.mxu0 0.0
        %668 = vmatpush1.msra.mxu0 0.0
        %669 = vmatprep.subr.mxu0 0.0
        %670 = vmatpush1.msra.mxu0 0.0
        %671 = vmatprep.subr.mxu0 0.0
        %672 = vmatpush1.msra.mxu0 0.0
        %673 = vmatprep.subr.mxu0 0.0
        %674 = vmatpush1.msra.mxu0 0.0
        %675 = vmatprep.subr.mxu0 0.0
        %676 = vmatpush1.msra.mxu0 0.0
        %677 = vmatprep.subr.mxu0 0.0
        %678 = vmatpush1.msra.mxu0 0.0
        %679 = vmatprep.subr.mxu0 0.0
        %680 = vmatpush1.msra.mxu0 0.0
        %681 = vmatprep.subr.mxu0 0.0
        %682 = vmatpush1.msra.mxu0 0.0
        %683 = vmatprep.subr.mxu0 0.0
        %684 = vmatpush1.msra.mxu0 0.0
        %685 = vmatprep.subr.mxu0 0.0
        %686 = vmatpush1.msra.mxu0 0.0
        %687 = vmatprep.mubr.f32.mxu0 0.0
        %688 = vmatmul.mubr.f32.gmra.mrb[0].mxu0 %v408
        %v689 = vpop.f32.mrb[0].mxu0
        %v690 = vadd.f32 %v374, %v689
        %v691 = vpop.f32.mrb[0].mxu0
        %v692 = vadd.f32 %v378, %v691
        %693 = vdwg.mxu0
        %694 = vmatprep.subr.mxu0 %v304
        %695 = vmatpush1.msra.mxu0 %v303
        %696 = vmatprep.subr.mxu0 %v316
        %697 = vmatpush1.msra.mxu0 %v315
        %698 = vmatprep.subr.mxu0 %v328
        %699 = vmatpush1.msra.mxu0 %v327
        %700 = vmatprep.subr.mxu0 %v340
        %701 = vmatpush1.msra.mxu0 %v339
        %702 = vmatprep.subr.mxu0 0.0
        %703 = vmatpush1.msra.mxu0 0.0
        %704 = vmatprep.subr.mxu0 0.0
        %705 = vmatpush1.msra.mxu0 0.0
        %706 = vmatprep.subr.mxu0 0.0
        %707 = vmatpush1.msra.mxu0 0.0
        %708 = vmatprep.subr.mxu0 0.0
        %709 = vmatpush1.msra.mxu0 0.0
        %710 = vmatprep.subr.mxu0 0.0
        %711 = vmatpush1.msra.mxu0 0.0
        %712 = vmatprep.subr.mxu0 0.0
        %713 = vmatpush1.msra.mxu0 0.0
        %714 = vmatprep.subr.mxu0 0.0
        %715 = vmatpush1.msra.mxu0 0.0
        %716 = vmatprep.subr.mxu0 0.0
        %717 = vmatpush1.msra.mxu0 0.0
        %718 = vmatprep.subr.mxu0 0.0
        %719 = vmatpush1.msra.mxu0 0.0
        %720 = vmatprep.subr.mxu0 0.0
        %721 = vmatpush1.msra.mxu0 0.0
        %722 = vmatprep.subr.mxu0 0.0
        %723 = vmatpush1.msra.mxu0 0.0
        %724 = vmatprep.subr.mxu0 0.0
        %725 = vmatpush1.msra.mxu0 0.0
        %726 = vmatprep.subr.mxu0 0.0
        %727 = vmatpush1.msra.mxu0 0.0
        %728 = vmatprep.subr.mxu0 0.0
        %729 = vmatpush1.msra.mxu0 0.0
        %730 = vmatprep.subr.mxu0 0.0
        %731 = vmatpush1.msra.mxu0 0.0
        %732 = vmatprep.subr.mxu0 0.0
        %733 = vmatpush1.msra.mxu0 0.0
        %734 = vmatprep.subr.mxu0 0.0
        %735 = vmatpush1.msra.mxu0 0.0
        %736 = vmatprep.subr.mxu0 0.0
        %737 = vmatpush1.msra.mxu0 0.0
        %738 = vmatprep.subr.mxu0 0.0
        %739 = vmatpush1.msra.mxu0 0.0
        %740 = vmatprep.subr.mxu0 0.0
        %741 = vmatpush1.msra.mxu0 0.0
        %742 = vmatprep.subr.mxu0 0.0
        %743 = vmatpush1.msra.mxu0 0.0
        %744 = vmatprep.subr.mxu0 0.0
        %745 = vmatpush1.msra.mxu0 0.0
        %746 = vmatprep.subr.mxu0 0.0
        %747 = vmatpush1.msra.mxu0 0.0
        %748 = vmatprep.subr.mxu0 0.0
        %749 = vmatpush1.msra.mxu0 0.0
        %750 = vmatprep.subr.mxu0 0.0
        %751 = vmatpush1.msra.mxu0 0.0
        %752 = vmatprep.subr.mxu0 0.0
        %753 = vmatpush1.msra.mxu0 0.0
        %754 = vmatprep.subr.mxu0 0.0
        %755 = vmatpush1.msra.mxu0 0.0
        %756 = vmatprep.subr.mxu0 0.0
        %757 = vmatpush1.msra.mxu0 0.0
        %758 = vmatprep.mubr.f32.mxu0 0.0
        %759 = vmatmul.mubr.f32.gmra.mrb[0].mxu0 %v408
        %v760 = vpop.f32.mrb[0].mxu0
        %v761 = vadd.f32 %v382, %v760
        %v762 = vpop.f32.mrb[0].mxu0
        %v763 = vadd.f32 %v386, %v762
        %764 = vdwg.mxu0
        %765 = vmatprep.subr.mxu0 %v306
        %766 = vmatpush1.msra.mxu0 %v305
        %767 = vmatprep.subr.mxu0 %v318
        %768 = vmatpush1.msra.mxu0 %v317
        %769 = vmatprep.subr.mxu0 %v330
        %770 = vmatpush1.msra.mxu0 %v329
        %771 = vmatprep.subr.mxu0 %v342
        %772 = vmatpush1.msra.mxu0 %v341
        %773 = vmatprep.subr.mxu0 0.0
        %774 = vmatpush1.msra.mxu0 0.0
        %775 = vmatprep.subr.mxu0 0.0
        %776 = vmatpush1.msra.mxu0 0.0
        %777 = vmatprep.subr.mxu0 0.0
        %778 = vmatpush1.msra.mxu0 0.0
        %779 = vmatprep.subr.mxu0 0.0
        %780 = vmatpush1.msra.mxu0 0.0
        %781 = vmatprep.subr.mxu0 0.0
        %782 = vmatpush1.msra.mxu0 0.0
        %783 = vmatprep.subr.mxu0 0.0
        %784 = vmatpush1.msra.mxu0 0.0
        %785 = vmatprep.subr.mxu0 0.0
        %786 = vmatpush1.msra.mxu0 0.0
        %787 = vmatprep.subr.mxu0 0.0
        %788 = vmatpush1.msra.mxu0 0.0
        %789 = vmatprep.subr.mxu0 0.0
        %790 = vmatpush1.msra.mxu0 0.0
        %791 = vmatprep.subr.mxu0 0.0
        %792 = vmatpush1.msra.mxu0 0.0
        %793 = vmatprep.subr.mxu0 0.0
        %794 = vmatpush1.msra.mxu0 0.0
        %795 = vmatprep.subr.mxu0 0.0
        %796 = vmatpush1.msra.mxu0 0.0
        %797 = vmatprep.subr.mxu0 0.0
        %798 = vmatpush1.msra.mxu0 0.0
        %799 = vmatprep.subr.mxu0 0.0
        %800 = vmatpush1.msra.mxu0 0.0
        %801 = vmatprep.subr.mxu0 0.0
        %802 = vmatpush1.msra.mxu0 0.0
        %803 = vmatprep.subr.mxu0 0.0
        %804 = vmatpush1.msra.mxu0 0.0
        %805 = vmatprep.subr.mxu0 0.0
        %806 = vmatpush1.msra.mxu0 0.0
        %807 = vmatprep.subr.mxu0 0.0
        %808 = vmatpush1.msra.mxu0 0.0
        %809 = vmatprep.subr.mxu0 0.0
        %810 = vmatpush1.msra.mxu0 0.0
        %811 = vmatprep.subr.mxu0 0.0
        %812 = vmatpush1.msra.mxu0 0.0
        %813 = vmatprep.subr.mxu0 0.0
        %814 = vmatpush1.msra.mxu0 0.0
        %815 = vmatprep.subr.mxu0 0.0
        %816 = vmatpush1.msra.mxu0 0.0
        %817 = vmatprep.subr.mxu0 0.0
        %818 = vmatpush1.msra.mxu0 0.0
        %819 = vmatprep.subr.mxu0 0.0
        %820 = vmatpush1.msra.mxu0 0.0
        %821 = vmatprep.subr.mxu0 0.0
        %822 = vmatpush1.msra.mxu0 0.0
        %823 = vmatprep.subr.mxu0 0.0
        %824 = vmatpush1.msra.mxu0 0.0
        %825 = vmatprep.subr.mxu0 0.0
        %826 = vmatpush1.msra.mxu0 0.0
        %827 = vmatprep.subr.mxu0 0.0
        %828 = vmatpush1.msra.mxu0 0.0
        %829 = vmatprep.mubr.f32.mxu0 0.0
        %830 = vmatmul.mubr.f32.gmra.mrb[0].mxu0 %v408
        %v831 = vpop.f32.mrb[0].mxu0
        %v832 = vadd.f32 %v390, %v831
        %v833 = vpop.f32.mrb[0].mxu0
        %v834 = vadd.f32 %v394, %v833
        %835 = vdwg.mxu0
        %v836 = vld [vmem:[%s3] sm:$0xf]
        %837 = vmatprep.subr.mxu0 0.0
        %838 = vmatpush1.xpose.msra.mxu0 %v619
        %839 = vmatprep.subr.mxu0 0.0
        %840 = vmatpush1.xpose.msra.mxu0 0.0
        %841 = vmatprep.subr.mxu0 0.0
        %842 = vmatpush1.xpose.msra.mxu0 0.0
        %843 = vmatprep.subr.mxu0 0.0
        %844 = vmatpush1.xpose.msra.mxu0 0.0
        %845 = vmatprep.subr.mxu0 0.0
        %846 = vmatpush1.xpose.msra.mxu0 0.0
        %847 = vmatprep.subr.mxu0 0.0
        %848 = vmatpush1.xpose.msra.mxu0 0.0
        %849 = vmatprep.subr.mxu0 0.0
        %850 = vmatpush1.xpose.msra.mxu0 0.0
        %851 = vmatprep.subr.mxu0 0.0
        %852 = vmatpush1.xpose.msra.mxu0 0.0
        %853 = vmatprep.subr.mxu0 0.0
        %854 = vmatpush1.xpose.msra.mxu0 0.0
        %855 = vmatprep.subr.mxu0 0.0
        %856 = vmatpush1.xpose.msra.mxu0 0.0
        %857 = vmatprep.subr.mxu0 0.0
        %858 = vmatpush1.xpose.msra.mxu0 0.0
        %859 = vmatprep.subr.mxu0 0.0
        %860 = vmatpush1.xpose.msra.mxu0 0.0
        %861 = vmatprep.subr.mxu0 0.0
        %862 = vmatpush1.xpose.msra.mxu0 0.0
        %863 = vmatprep.subr.mxu0 0.0
        %864 = vmatpush1.xpose.msra.mxu0 0.0
        %865 = vmatprep.subr.mxu0 0.0
        %866 = vmatpush1.xpose.msra.mxu0 0.0
        %867 = vmatprep.subr.mxu0 0.0
        %868 = vmatpush1.xpose.msra.mxu0 0.0
        %869 = vmatprep.subr.mxu0 0.0
        %870 = vmatpush1.xpose.msra.mxu0 0.0
        %871 = vmatprep.subr.mxu0 0.0
        %872 = vmatpush1.xpose.msra.mxu0 0.0
        %873 = vmatprep.subr.mxu0 0.0
        %874 = vmatpush1.xpose.msra.mxu0 0.0
        %875 = vmatprep.subr.mxu0 0.0
        %876 = vmatpush1.xpose.msra.mxu0 0.0
        %877 = vmatprep.subr.mxu0 0.0
        %878 = vmatpush1.xpose.msra.mxu0 0.0
        %879 = vmatprep.subr.mxu0 0.0
        %880 = vmatpush1.xpose.msra.mxu0 0.0
        %881 = vmatprep.subr.mxu0 0.0
        %882 = vmatpush1.xpose.msra.mxu0 0.0
        %883 = vmatprep.subr.mxu0 0.0
        %884 = vmatpush1.xpose.msra.mxu0 0.0
        %885 = vmatprep.subr.mxu0 0.0
        %886 = vmatpush1.xpose.msra.mxu0 0.0
        %887 = vmatprep.subr.mxu0 0.0
        %888 = vmatpush1.xpose.msra.mxu0 0.0
        %889 = vmatprep.subr.mxu0 0.0
        %890 = vmatpush1.xpose.msra.mxu0 0.0
        %891 = vmatprep.subr.mxu0 0.0
        %892 = vmatpush1.xpose.msra.mxu0 0.0
        %893 = vmatprep.subr.mxu0 0.0
        %894 = vmatpush1.xpose.msra.mxu0 0.0
        %895 = vmatprep.subr.mxu0 0.0
        %896 = vmatpush1.xpose.msra.mxu0 0.0
        %897 = vmatprep.subr.mxu0 0.0
        %898 = vmatpush1.xpose.msra.mxu0 0.0
        %899 = vmatprep.subr.mxu0 0.0
        %900 = vmatpush1.xpose.msra.mxu0 0.0
        %901 = vmatprep.mubr.f32.mxu0 0.0
        %902 = vmatmul.mubr.f32.gmra.mrb[0].mxu0 %v477
        %v903 = vpop.f32.mrb[0].mxu0
        %v904 = vadd.f32 0.0, %v903
        %v905 = vpop.f32.mrb[0].mxu0
        %906 = vdwg.mxu0
        %v907 = vmul.f32 %v904, 0.35355338
        %vm908 = vcmask 64512
        %v909 = vsel %vm908, %v907, -inf
        %910 = vmax.xlane.f32.xlu0 %v909
        %v911 = vpop.xlane.xlu0 %910
        %v912 = vsub.f32 %v907, %v911
        %v913 = vmul.f32 %v912, 1.442695
        %v914 = vpow.pop %v913
        %v915 = vsel %vm908, %v914, 0.0
        %916 = vadd.xlane.f32.xlu0 %v915
        %v917 = vpop.xlane.xlu0 %916
        %v919 = vsel %vm908, %v914, 0
        %921 = vmatprep.subr.mxu0 0.0
        %922 = vmatpush1.msra.mxu0 %v761
        %923 = vmatprep.subr.mxu0 0.0
        %924 = vmatpush1.msra.mxu0 0.0
        %925 = vmatprep.subr.mxu0 0.0
        %926 = vmatpush1.msra.mxu0 0.0
        %927 = vmatprep.subr.mxu0 0.0
        %928 = vmatpush1.msra.mxu0 0.0
        %929 = vmatprep.subr.mxu0 0.0
        %930 = vmatpush1.msra.mxu0 0.0
        %931 = vmatprep.subr.mxu0 0.0
        %932 = vmatpush1.msra.mxu0 0.0
        %933 = vmatprep.subr.mxu0 0.0
        %934 = vmatpush1.msra.mxu0 0.0
        %935 = vmatprep.subr.mxu0 0.0
        %936 = vmatpush1.msra.mxu0 0.0
        %937 = vmatprep.subr.mxu0 0.0
        %938 = vmatpush1.msra.mxu0 0.0
        %939 = vmatprep.subr.mxu0 0.0
        %940 = vmatpush1.msra.mxu0 0.0
        %941 = vmatprep.subr.mxu0 0.0
        %942 = vmatpush1.msra.mxu0 0.0
        %943 = vmatprep.subr.mxu0 0.0
        %944 = vmatpush1.msra.mxu0 0.0
        %945 = vmatprep.subr.mxu0 0.0
        %946 = vmatpush1.msra.mxu0 0.0
        %947 = vmatprep.subr.mxu0 0.0
        %948 = vmatpush1.msra.mxu0 0.0
        %949 = vmatprep.subr.mxu0 0.0
        %950 = vmatpush1.msra.mxu0 0.0
        %951 = vmatprep.subr.mxu0 0.0
        %952 = vmatpush1.msra.mxu0 0.0
        %953 = vmatprep.subr.mxu0 0.0
        %954 = vmatpush1.msra.mxu0 0.0
        %955 = vmatprep.subr.mxu0 0.0
        %956 = vmatpush1.msra.mxu0 0.0
        %957 = vmatprep.subr.mxu0 0.0
        %958 = vmatpush1.msra.mxu0 0.0
        %959 = vmatprep.subr.mxu0 0.0
        %960 = vmatpush1.msra.mxu0 0.0
        %961 = vmatprep.subr.mxu0 0.0
        %962 = vmatpush1.msra.mxu0 0.0
        %963 = vmatprep.subr.mxu0 0.0
        %964 = vmatpush1.msra.mxu0 0.0
        %965 = vmatprep.subr.mxu0 0.0
        %966 = vmatpush1.msra.mxu0 0.0
        %967 = vmatprep.subr.mxu0 0.0
        %968 = vmatpush1.msra.mxu0 0.0
        %969 = vmatprep.subr.mxu0 0.0
        %970 = vmatpush1.msra.mxu0 0.0
        %971 = vmatprep.subr.mxu0 0.0
        %972 = vmatpush1.msra.mxu0 0.0
        %973 = vmatprep.subr.mxu0 0.0
        %974 = vmatpush1.msra.mxu0 0.0
        %975 = vmatprep.subr.mxu0 0.0
        %976 = vmatpush1.msra.mxu0 0.0
        %977 = vmatprep.subr.mxu0 0.0
        %978 = vmatpush1.msra.mxu0 0.0
        %979 = vmatprep.subr.mxu0 0.0
        %980 = vmatpush1.msra.mxu0 0.0
        %981 = vmatprep.subr.mxu0 0.0
        %982 = vmatpush1.msra.mxu0 0.0
        %983 = vmatprep.subr.mxu0 0.0
        %984 = vmatpush1.msra.mxu0 0.0
        %985 = vmatprep.mubr.f32.mxu0 0.0
        %986 = vmatmul.mubr.f32.gmra.mrb[0].mxu0 %v919
        %v987 = vpop.f32.mrb[0].mxu0
        %v988 = vadd.f32 0.0, %v987
        %v989 = vpop.f32.mrb[0].mxu0
        %990 = vdwg.mxu0
        %v992 = vlaneseq
        %v993 = vshrl.u32 %v992, 7
        %v994 = vsub.s32 0, %v993
        %v995 = vrot.slane %v836, %v994
        %v997 = vmul.f32 %v988, %v995
        %998 = vadd.xlane.f32.xlu0 %v997
        %v999 = vpop.xlane.xlu0 %998
        %v1000 = vrcp.pop %v917
        %v1001 = vmul.f32 %v999, %v1000
        %v1002 = vadd.f32 %v1001, 0.0
        %1003 = vmatprep.subr.mxu0 0.0
        %1004 = vmatpush1.xpose.msra.mxu0 %v621
        %1005 = vmatprep.subr.mxu0 0.0
        %1006 = vmatpush1.xpose.msra.mxu0 0.0
        %1007 = vmatprep.subr.mxu0 0.0
        %1008 = vmatpush1.xpose.msra.mxu0 0.0
        %1009 = vmatprep.subr.mxu0 0.0
        %1010 = vmatpush1.xpose.msra.mxu0 0.0
        %1011 = vmatprep.subr.mxu0 0.0
        %1012 = vmatpush1.xpose.msra.mxu0 0.0
        %1013 = vmatprep.subr.mxu0 0.0
        %1014 = vmatpush1.xpose.msra.mxu0 0.0
        %1015 = vmatprep.subr.mxu0 0.0
        %1016 = vmatpush1.xpose.msra.mxu0 0.0
        %1017 = vmatprep.subr.mxu0 0.0
        %1018 = vmatpush1.xpose.msra.mxu0 0.0
        %1019 = vmatprep.subr.mxu0 0.0
        %1020 = vmatpush1.xpose.msra.mxu0 0.0
        %1021 = vmatprep.subr.mxu0 0.0
        %1022 = vmatpush1.xpose.msra.mxu0 0.0
        %1023 = vmatprep.subr.mxu0 0.0
        %1024 = vmatpush1.xpose.msra.mxu0 0.0
        %1025 = vmatprep.subr.mxu0 0.0
        %1026 = vmatpush1.xpose.msra.mxu0 0.0
        %1027 = vmatprep.subr.mxu0 0.0
        %1028 = vmatpush1.xpose.msra.mxu0 0.0
        %1029 = vmatprep.subr.mxu0 0.0
        %1030 = vmatpush1.xpose.msra.mxu0 0.0
        %1031 = vmatprep.subr.mxu0 0.0
        %1032 = vmatpush1.xpose.msra.mxu0 0.0
        %1033 = vmatprep.subr.mxu0 0.0
        %1034 = vmatpush1.xpose.msra.mxu0 0.0
        %1035 = vmatprep.subr.mxu0 0.0
        %1036 = vmatpush1.xpose.msra.mxu0 0.0
        %1037 = vmatprep.subr.mxu0 0.0
        %1038 = vmatpush1.xpose.msra.mxu0 0.0
        %1039 = vmatprep.subr.mxu0 0.0
        %1040 = vmatpush1.xpose.msra.mxu0 0.0
        %1041 = vmatprep.subr.mxu0 0.0
        %1042 = vmatpush1.xpose.msra.mxu0 0.0
        %1043 = vmatprep.subr.mxu0 0.0
        %1044 = vmatpush1.xpose.msra.mxu0 0.0
        %1045 = vmatprep.subr.mxu0 0.0
        %1046 = vmatpush1.xpose.msra.mxu0 0.0
        %1047 = vmatprep.subr.mxu0 0.0
        %1048 = vmatpush1.xpose.msra.mxu0 0.0
        %1049 = vmatprep.subr.mxu0 0.0
        %1050 = vmatpush1.xpose.msra.mxu0 0.0
        %1051 = vmatprep.subr.mxu0 0.0
        %1052 = vmatpush1.xpose.msra.mxu0 0.0
        %1053 = vmatprep.subr.mxu0 0.0
        %1054 = vmatpush1.xpose.msra.mxu0 0.0
        %1055 = vmatprep.subr.mxu0 0.0
        %1056 = vmatpush1.xpose.msra.mxu0 0.0
        %1057 = vmatprep.subr.mxu0 0.0
        %1058 = vmatpush1.xpose.msra.mxu0 0.0
        %1059 = vmatprep.subr.mxu0 0.0
        %1060 = vmatpush1.xpose.msra.mxu0 0.0
        %1061 = vmatprep.subr.mxu0 0.0
        %1062 = vmatpush1.xpose.msra.mxu0 0.0
        %1063 = vmatprep.subr.mxu0 0.0
        %1064 = vmatpush1.xpose.msra.mxu0 0.0
        %1065 = vmatprep.subr.mxu0 0.0
        %1066 = vmatpush1.xpose.msra.mxu0 0.0
        %1067 = vmatprep.mubr.f32.mxu0 0.0
        %1068 = vmatmul.mubr.f32.gmra.mrb[0].mxu0 %v479
        %v1069 = vpop.f32.mrb[0].mxu0
        %v1070 = vadd.f32 0.0, %v1069
        %v1071 = vpop.f32.mrb[0].mxu0
        %1072 = vdwg.mxu0
        %v1073 = vmul.f32 %v1070, 0.35355338
        %v1074 = vsel %vm908, %v1073, -inf
        %1075 = vmax.xlane.f32.xlu0 %v1074
        %v1076 = vpop.xlane.xlu0 %1075
        %v1077 = vsub.f32 %v1073, %v1076
        %v1078 = vmul.f32 %v1077, 1.442695
        %v1079 = vpow.pop %v1078
        %v1080 = vsel %vm908, %v1079, 0.0
        %1081 = vadd.xlane.f32.xlu0 %v1080
        %v1082 = vpop.xlane.xlu0 %1081
        %v1084 = vsel %vm908, %v1079, 0
        %1086 = vmatprep.subr.mxu0 0.0
        %1087 = vmatpush1.msra.mxu0 %v763
        %1088 = vmatprep.subr.mxu0 0.0
        %1089 = vmatpush1.msra.mxu0 0.0
        %1090 = vmatprep.subr.mxu0 0.0
        %1091 = vmatpush1.msra.mxu0 0.0
        %1092 = vmatprep.subr.mxu0 0.0
        %1093 = vmatpush1.msra.mxu0 0.0
        %1094 = vmatprep.subr.mxu0 0.0
        %1095 = vmatpush1.msra.mxu0 0.0
        %1096 = vmatprep.subr.mxu0 0.0
        %1097 = vmatpush1.msra.mxu0 0.0
        %1098 = vmatprep.subr.mxu0 0.0
        %1099 = vmatpush1.msra.mxu0 0.0
        %1100 = vmatprep.subr.mxu0 0.0
        %1101 = vmatpush1.msra.mxu0 0.0
        %1102 = vmatprep.subr.mxu0 0.0
        %1103 = vmatpush1.msra.mxu0 0.0
        %1104 = vmatprep.subr.mxu0 0.0
        %1105 = vmatpush1.msra.mxu0 0.0
        %1106 = vmatprep.subr.mxu0 0.0
        %1107 = vmatpush1.msra.mxu0 0.0
        %1108 = vmatprep.subr.mxu0 0.0
        %1109 = vmatpush1.msra.mxu0 0.0
        %1110 = vmatprep.subr.mxu0 0.0
        %1111 = vmatpush1.msra.mxu0 0.0
        %1112 = vmatprep.subr.mxu0 0.0
        %1113 = vmatpush1.msra.mxu0 0.0
        %1114 = vmatprep.subr.mxu0 0.0
        %1115 = vmatpush1.msra.mxu0 0.0
        %1116 = vmatprep.subr.mxu0 0.0
        %1117 = vmatpush1.msra.mxu0 0.0
        %1118 = vmatprep.subr.mxu0 0.0
        %1119 = vmatpush1.msra.mxu0 0.0
        %1120 = vmatprep.subr.mxu0 0.0
        %1121 = vmatpush1.msra.mxu0 0.0
        %1122 = vmatprep.subr.mxu0 0.0
        %1123 = vmatpush1.msra.mxu0 0.0
        %1124 = vmatprep.subr.mxu0 0.0
        %1125 = vmatpush1.msra.mxu0 0.0
        %1126 = vmatprep.subr.mxu0 0.0
        %1127 = vmatpush1.msra.mxu0 0.0
        %1128 = vmatprep.subr.mxu0 0.0
        %1129 = vmatpush1.msra.mxu0 0.0
        %1130 = vmatprep.subr.mxu0 0.0
        %1131 = vmatpush1.msra.mxu0 0.0
        %1132 = vmatprep.subr.mxu0 0.0
        %1133 = vmatpush1.msra.mxu0 0.0
        %1134 = vmatprep.subr.mxu0 0.0
        %1135 = vmatpush1.msra.mxu0 0.0
        %1136 = vmatprep.subr.mxu0 0.0
        %1137 = vmatpush1.msra.mxu0 0.0
        %1138 = vmatprep.subr.mxu0 0.0
        %1139 = vmatpush1.msra.mxu0 0.0
        %1140 = vmatprep.subr.mxu0 0.0
        %1141 = vmatpush1.msra.mxu0 0.0
        %1142 = vmatprep.subr.mxu0 0.0
        %1143 = vmatpush1.msra.mxu0 0.0
        %1144 = vmatprep.subr.mxu0 0.0
        %1145 = vmatpush1.msra.mxu0 0.0
        %1146 = vmatprep.subr.mxu0 0.0
        %1147 = vmatpush1.msra.mxu0 0.0
        %1148 = vmatprep.subr.mxu0 0.0
        %1149 = vmatpush1.msra.mxu0 0.0
        %1150 = vmatprep.mubr.f32.mxu0 0.0
        %1151 = vmatmul.mubr.f32.gmra.mrb[0].mxu0 %v1084
        %v1152 = vpop.f32.mrb[0].mxu0
        %v1153 = vadd.f32 0.0, %v1152
        %v1154 = vpop.f32.mrb[0].mxu0
        %1155 = vdwg.mxu0
        %v1156 = vrot.slane %v836, 1
        %v1157 = vlaneseq
        %v1158 = vshrl.u32 %v1157, 7
        %v1159 = vsub.s32 0, %v1158
        %v1160 = vrot.slane %v1156, %v1159
        %v1162 = vmul.f32 %v1153, %v1160
        %1163 = vadd.xlane.f32.xlu0 %v1162
        %v1164 = vpop.xlane.xlu0 %1163
        %v1165 = vrcp.pop %v1082
        %v1166 = vmul.f32 %v1164, %v1165
        %v1167 = vadd.f32 %v1002, %v1166
        %1168 = vmatprep.subr.mxu0 0.0
        %1169 = vmatpush1.xpose.msra.mxu0 %v690
        %1170 = vmatprep.subr.mxu0 0.0
        %1171 = vmatpush1.xpose.msra.mxu0 0.0
        %1172 = vmatprep.subr.mxu0 0.0
        %1173 = vmatpush1.xpose.msra.mxu0 0.0
        %1174 = vmatprep.subr.mxu0 0.0
        %1175 = vmatpush1.xpose.msra.mxu0 0.0
        %1176 = vmatprep.subr.mxu0 0.0
        %1177 = vmatpush1.xpose.msra.mxu0 0.0
        %1178 = vmatprep.subr.mxu0 0.0
        %1179 = vmatpush1.xpose.msra.mxu0 0.0
        %1180 = vmatprep.subr.mxu0 0.0
        %1181 = vmatpush1.xpose.msra.mxu0 0.0
        %1182 = vmatprep.subr.mxu0 0.0
        %1183 = vmatpush1.xpose.msra.mxu0 0.0
        %1184 = vmatprep.subr.mxu0 0.0
        %1185 = vmatpush1.xpose.msra.mxu0 0.0
        %1186 = vmatprep.subr.mxu0 0.0
        %1187 = vmatpush1.xpose.msra.mxu0 0.0
        %1188 = vmatprep.subr.mxu0 0.0
        %1189 = vmatpush1.xpose.msra.mxu0 0.0
        %1190 = vmatprep.subr.mxu0 0.0
        %1191 = vmatpush1.xpose.msra.mxu0 0.0
        %1192 = vmatprep.subr.mxu0 0.0
        %1193 = vmatpush1.xpose.msra.mxu0 0.0
        %1194 = vmatprep.subr.mxu0 0.0
        %1195 = vmatpush1.xpose.msra.mxu0 0.0
        %1196 = vmatprep.subr.mxu0 0.0
        %1197 = vmatpush1.xpose.msra.mxu0 0.0
        %1198 = vmatprep.subr.mxu0 0.0
        %1199 = vmatpush1.xpose.msra.mxu0 0.0
        %1200 = vmatprep.subr.mxu0 0.0
        %1201 = vmatpush1.xpose.msra.mxu0 0.0
        %1202 = vmatprep.subr.mxu0 0.0
        %1203 = vmatpush1.xpose.msra.mxu0 0.0
        %1204 = vmatprep.subr.mxu0 0.0
        %1205 = vmatpush1.xpose.msra.mxu0 0.0
        %1206 = vmatprep.subr.mxu0 0.0
        %1207 = vmatpush1.xpose.msra.mxu0 0.0
        %1208 = vmatprep.subr.mxu0 0.0
        %1209 = vmatpush1.xpose.msra.mxu0 0.0
        %1210 = vmatprep.subr.mxu0 0.0
        %1211 = vmatpush1.xpose.msra.mxu0 0.0
        %1212 = vmatprep.subr.mxu0 0.0
        %1213 = vmatpush1.xpose.msra.mxu0 0.0
        %1214 = vmatprep.subr.mxu0 0.0
        %1215 = vmatpush1.xpose.msra.mxu0 0.0
        %1216 = vmatprep.subr.mxu0 0.0
        %1217 = vmatpush1.xpose.msra.mxu0 0.0
        %1218 = vmatprep.subr.mxu0 0.0
        %1219 = vmatpush1.xpose.msra.mxu0 0.0
        %1220 = vmatprep.subr.mxu0 0.0
        %1221 = vmatpush1.xpose.msra.mxu0 0.0
        %1222 = vmatprep.subr.mxu0 0.0
        %1223 = vmatpush1.xpose.msra.mxu0 0.0
        %1224 = vmatprep.subr.mxu0 0.0
        %1225 = vmatpush1.xpose.msra.mxu0 0.0
        %1226 = vmatprep.subr.mxu0 0.0
        %1227 = vmatpush1.xpose.msra.mxu0 0.0
        %1228 = vmatprep.subr.mxu0 0.0
        %1229 = vmatpush1.xpose.msra.mxu0 0.0
        %1230 = vmatprep.subr.mxu0 0.0
        %1231 = vmatpush1.xpose.msra.mxu0 0.0
        %1232 = vmatprep.mubr.f32.mxu0 0.0
        %1233 = vmatmul.mubr.f32.gmra.mrb[0].mxu0 %v548
        %v1234 = vpop.f32.mrb[0].mxu0
        %v1235 = vadd.f32 0.0, %v1234
        %v1236 = vpop.f32.mrb[0].mxu0
        %1237 = vdwg.mxu0
        %v1238 = vmul.f32 %v1235, 0.35355338
        %v1239 = vsel %vm908, %v1238, -inf
        %1240 = vmax.xlane.f32.xlu0 %v1239
        %v1241 = vpop.xlane.xlu0 %1240
        %v1242 = vsub.f32 %v1238, %v1241
        %v1243 = vmul.f32 %v1242, 1.442695
        %v1244 = vpow.pop %v1243
        %v1245 = vsel %vm908, %v1244, 0.0
        %1246 = vadd.xlane.f32.xlu0 %v1245
        %v1247 = vpop.xlane.xlu0 %1246
        %v1249 = vsel %vm908, %v1244, 0
        %1251 = vmatprep.subr.mxu0 0.0
        %1252 = vmatpush1.msra.mxu0 %v832
        %1253 = vmatprep.subr.mxu0 0.0
        %1254 = vmatpush1.msra.mxu0 0.0
        %1255 = vmatprep.subr.mxu0 0.0
        %1256 = vmatpush1.msra.mxu0 0.0
        %1257 = vmatprep.subr.mxu0 0.0
        %1258 = vmatpush1.msra.mxu0 0.0
        %1259 = vmatprep.subr.mxu0 0.0
        %1260 = vmatpush1.msra.mxu0 0.0
        %1261 = vmatprep.subr.mxu0 0.0
        %1262 = vmatpush1.msra.mxu0 0.0
        %1263 = vmatprep.subr.mxu0 0.0
        %1264 = vmatpush1.msra.mxu0 0.0
        %1265 = vmatprep.subr.mxu0 0.0
        %1266 = vmatpush1.msra.mxu0 0.0
        %1267 = vmatprep.subr.mxu0 0.0
        %1268 = vmatpush1.msra.mxu0 0.0
        %1269 = vmatprep.subr.mxu0 0.0
        %1270 = vmatpush1.msra.mxu0 0.0
        %1271 = vmatprep.subr.mxu0 0.0
        %1272 = vmatpush1.msra.mxu0 0.0
        %1273 = vmatprep.subr.mxu0 0.0
        %1274 = vmatpush1.msra.mxu0 0.0
        %1275 = vmatprep.subr.mxu0 0.0
        %1276 = vmatpush1.msra.mxu0 0.0
        %1277 = vmatprep.subr.mxu0 0.0
        %1278 = vmatpush1.msra.mxu0 0.0
        %1279 = vmatprep.subr.mxu0 0.0
        %1280 = vmatpush1.msra.mxu0 0.0
        %1281 = vmatprep.subr.mxu0 0.0
        %1282 = vmatpush1.msra.mxu0 0.0
        %1283 = vmatprep.subr.mxu0 0.0
        %1284 = vmatpush1.msra.mxu0 0.0
        %1285 = vmatprep.subr.mxu0 0.0
        %1286 = vmatpush1.msra.mxu0 0.0
        %1287 = vmatprep.subr.mxu0 0.0
        %1288 = vmatpush1.msra.mxu0 0.0
        %1289 = vmatprep.subr.mxu0 0.0
        %1290 = vmatpush1.msra.mxu0 0.0
        %1291 = vmatprep.subr.mxu0 0.0
        %1292 = vmatpush1.msra.mxu0 0.0
        %1293 = vmatprep.subr.mxu0 0.0
        %1294 = vmatpush1.msra.mxu0 0.0
        %1295 = vmatprep.subr.mxu0 0.0
        %1296 = vmatpush1.msra.mxu0 0.0
        %1297 = vmatprep.subr.mxu0 0.0
        %1298 = vmatpush1.msra.mxu0 0.0
        %1299 = vmatprep.subr.mxu0 0.0
        %1300 = vmatpush1.msra.mxu0 0.0
        %1301 = vmatprep.subr.mxu0 0.0
        %1302 = vmatpush1.msra.mxu0 0.0
        %1303 = vmatprep.subr.mxu0 0.0
        %1304 = vmatpush1.msra.mxu0 0.0
        %1305 = vmatprep.subr.mxu0 0.0
        %1306 = vmatpush1.msra.mxu0 0.0
        %1307 = vmatprep.subr.mxu0 0.0
        %1308 = vmatpush1.msra.mxu0 0.0
        %1309 = vmatprep.subr.mxu0 0.0
        %1310 = vmatpush1.msra.mxu0 0.0
        %1311 = vmatprep.subr.mxu0 0.0
        %1312 = vmatpush1.msra.mxu0 0.0
        %1313 = vmatprep.subr.mxu0 0.0
        %1314 = vmatpush1.msra.mxu0 0.0
        %1315 = vmatprep.mubr.f32.mxu0 0.0
        %1316 = vmatmul.mubr.f32.gmra.mrb[0].mxu0 %v1249
        %v1317 = vpop.f32.mrb[0].mxu0
        %v1318 = vadd.f32 0.0, %v1317
        %v1319 = vpop.f32.mrb[0].mxu0
        %1320 = vdwg.mxu0
        %v1321 = vrot.slane %v836, 2
        %v1322 = vlaneseq
        %v1323 = vshrl.u32 %v1322, 7
        %v1324 = vsub.s32 0, %v1323
        %v1325 = vrot.slane %v1321, %v1324
        %v1327 = vmul.f32 %v1318, %v1325
        %1328 = vadd.xlane.f32.xlu0 %v1327
        %v1329 = vpop.xlane.xlu0 %1328
        %v1330 = vrcp.pop %v1247
        %v1331 = vmul.f32 %v1329, %v1330
        %v1332 = vadd.f32 %v1167, %v1331
        %1333 = vmatprep.subr.mxu0 0.0
        %1334 = vmatpush1.xpose.msra.mxu0 %v692
        %1335 = vmatprep.subr.mxu0 0.0
        %1336 = vmatpush1.xpose.msra.mxu0 0.0
        %1337 = vmatprep.subr.mxu0 0.0
        %1338 = vmatpush1.xpose.msra.mxu0 0.0
        %1339 = vmatprep.subr.mxu0 0.0
        %1340 = vmatpush1.xpose.msra.mxu0 0.0
        %1341 = vmatprep.subr.mxu0 0.0
        %1342 = vmatpush1.xpose.msra.mxu0 0.0
        %1343 = vmatprep.subr.mxu0 0.0
        %1344 = vmatpush1.xpose.msra.mxu0 0.0
        %1345 = vmatprep.subr.mxu0 0.0
        %1346 = vmatpush1.xpose.msra.mxu0 0.0
        %1347 = vmatprep.subr.mxu0 0.0
        %1348 = vmatpush1.xpose.msra.mxu0 0.0
        %1349 = vmatprep.subr.mxu0 0.0
        %1350 = vmatpush1.xpose.msra.mxu0 0.0
        %1351 = vmatprep.subr.mxu0 0.0
        %1352 = vmatpush1.xpose.msra.mxu0 0.0
        %1353 = vmatprep.subr.mxu0 0.0
        %1354 = vmatpush1.xpose.msra.mxu0 0.0
        %1355 = vmatprep.subr.mxu0 0.0
        %1356 = vmatpush1.xpose.msra.mxu0 0.0
        %1357 = vmatprep.subr.mxu0 0.0
        %1358 = vmatpush1.xpose.msra.mxu0 0.0
        %1359 = vmatprep.subr.mxu0 0.0
        %1360 = vmatpush1.xpose.msra.mxu0 0.0
        %1361 = vmatprep.subr.mxu0 0.0
        %1362 = vmatpush1.xpose.msra.mxu0 0.0
        %1363 = vmatprep.subr.mxu0 0.0
        %1364 = vmatpush1.xpose.msra.mxu0 0.0
        %1365 = vmatprep.subr.mxu0 0.0
        %1366 = vmatpush1.xpose.msra.mxu0 0.0
        %1367 = vmatprep.subr.mxu0 0.0
        %1368 = vmatpush1.xpose.msra.mxu0 0.0
        %1369 = vmatprep.subr.mxu0 0.0
        %1370 = vmatpush1.xpose.msra.mxu0 0.0
        %1371 = vmatprep.subr.mxu0 0.0
        %1372 = vmatpush1.xpose.msra.mxu0 0.0
        %1373 = vmatprep.subr.mxu0 0.0
        %1374 = vmatpush1.xpose.msra.mxu0 0.0
        %1375 = vmatprep.subr.mxu0 0.0
        %1376 = vmatpush1.xpose.msra.mxu0 0.0
        %1377 = vmatprep.subr.mxu0 0.0
        %1378 = vmatpush1.xpose.msra.mxu0 0.0
        %1379 = vmatprep.subr.mxu0 0.0
        %1380 = vmatpush1.xpose.msra.mxu0 0.0
        %1381 = vmatprep.subr.mxu0 0.0
        %1382 = vmatpush1.xpose.msra.mxu0 0.0
        %1383 = vmatprep.subr.mxu0 0.0
        %1384 = vmatpush1.xpose.msra.mxu0 0.0
        %1385 = vmatprep.subr.mxu0 0.0
        %1386 = vmatpush1.xpose.msra.mxu0 0.0
        %1387 = vmatprep.subr.mxu0 0.0
        %1388 = vmatpush1.xpose.msra.mxu0 0.0
        %1389 = vmatprep.subr.mxu0 0.0
        %1390 = vmatpush1.xpose.msra.mxu0 0.0
        %1391 = vmatprep.subr.mxu0 0.0
        %1392 = vmatpush1.xpose.msra.mxu0 0.0
        %1393 = vmatprep.subr.mxu0 0.0
        %1394 = vmatpush1.xpose.msra.mxu0 0.0
        %1395 = vmatprep.subr.mxu0 0.0
        %1396 = vmatpush1.xpose.msra.mxu0 0.0
        %1397 = vmatprep.mubr.f32.mxu0 0.0
        %1398 = vmatmul.mubr.f32.gmra.mrb[0].mxu0 %v550
        %v1399 = vpop.f32.mrb[0].mxu0
        %v1400 = vadd.f32 0.0, %v1399
        %v1401 = vpop.f32.mrb[0].mxu0
        %1402 = vdwg.mxu0
        %v1403 = vmul.f32 %v1400, 0.35355338
        %v1404 = vsel %vm908, %v1403, -inf
        %1405 = vmax.xlane.f32.xlu0 %v1404
        %v1406 = vpop.xlane.xlu0 %1405
        %v1407 = vsub.f32 %v1403, %v1406
        %v1408 = vmul.f32 %v1407, 1.442695
        %v1409 = vpow.pop %v1408
        %v1410 = vsel %vm908, %v1409, 0.0
        %1411 = vadd.xlane.f32.xlu0 %v1410
        %v1412 = vpop.xlane.xlu0 %1411
        %v1414 = vsel %vm908, %v1409, 0
        %1416 = vmatprep.subr.mxu0 0.0
        %1417 = vmatpush1.msra.mxu0 %v834
        %1418 = vmatprep.subr.mxu0 0.0
        %1419 = vmatpush1.msra.mxu0 0.0
        %1420 = vmatprep.subr.mxu0 0.0
        %1421 = vmatpush1.msra.mxu0 0.0
        %1422 = vmatprep.subr.mxu0 0.0
        %1423 = vmatpush1.msra.mxu0 0.0
        %1424 = vmatprep.subr.mxu0 0.0
        %1425 = vmatpush1.msra.mxu0 0.0
        %1426 = vmatprep.subr.mxu0 0.0
        %1427 = vmatpush1.msra.mxu0 0.0
        %1428 = vmatprep.subr.mxu0 0.0
        %1429 = vmatpush1.msra.mxu0 0.0
        %1430 = vmatprep.subr.mxu0 0.0
        %1431 = vmatpush1.msra.mxu0 0.0
        %1432 = vmatprep.subr.mxu0 0.0
        %1433 = vmatpush1.msra.mxu0 0.0
        %1434 = vmatprep.subr.mxu0 0.0
        %1435 = vmatpush1.msra.mxu0 0.0
        %1436 = vmatprep.subr.mxu0 0.0
        %1437 = vmatpush1.msra.mxu0 0.0
        %1438 = vmatprep.subr.mxu0 0.0
        %1439 = vmatpush1.msra.mxu0 0.0
        %1440 = vmatprep.subr.mxu0 0.0
        %1441 = vmatpush1.msra.mxu0 0.0
        %1442 = vmatprep.subr.mxu0 0.0
        %1443 = vmatpush1.msra.mxu0 0.0
        %1444 = vmatprep.subr.mxu0 0.0
        %1445 = vmatpush1.msra.mxu0 0.0
        %1446 = vmatprep.subr.mxu0 0.0
        %1447 = vmatpush1.msra.mxu0 0.0
        %1448 = vmatprep.subr.mxu0 0.0
        %1449 = vmatpush1.msra.mxu0 0.0
        %1450 = vmatprep.subr.mxu0 0.0
        %1451 = vmatpush1.msra.mxu0 0.0
        %1452 = vmatprep.subr.mxu0 0.0
        %1453 = vmatpush1.msra.mxu0 0.0
        %1454 = vmatprep.subr.mxu0 0.0
        %1455 = vmatpush1.msra.mxu0 0.0
        %1456 = vmatprep.subr.mxu0 0.0
        %1457 = vmatpush1.msra.mxu0 0.0
        %1458 = vmatprep.subr.mxu0 0.0
        %1459 = vmatpush1.msra.mxu0 0.0
        %1460 = vmatprep.subr.mxu0 0.0
        %1461 = vmatpush1.msra.mxu0 0.0
        %1462 = vmatprep.subr.mxu0 0.0
        %1463 = vmatpush1.msra.mxu0 0.0
        %1464 = vmatprep.subr.mxu0 0.0
        %1465 = vmatpush1.msra.mxu0 0.0
        %1466 = vmatprep.subr.mxu0 0.0
        %1467 = vmatpush1.msra.mxu0 0.0
        %1468 = vmatprep.subr.mxu0 0.0
        %1469 = vmatpush1.msra.mxu0 0.0
        %1470 = vmatprep.subr.mxu0 0.0
        %1471 = vmatpush1.msra.mxu0 0.0
        %1472 = vmatprep.subr.mxu0 0.0
        %1473 = vmatpush1.msra.mxu0 0.0
        %1474 = vmatprep.subr.mxu0 0.0
        %1475 = vmatpush1.msra.mxu0 0.0
        %1476 = vmatprep.subr.mxu0 0.0
        %1477 = vmatpush1.msra.mxu0 0.0
        %1478 = vmatprep.subr.mxu0 0.0
        %1479 = vmatpush1.msra.mxu0 0.0
        %1480 = vmatprep.mubr.f32.mxu0 0.0
        %1481 = vmatmul.mubr.f32.gmra.mrb[0].mxu0 %v1414
        %v1482 = vpop.f32.mrb[0].mxu0
        %v1483 = vadd.f32 0.0, %v1482
        %v1484 = vpop.f32.mrb[0].mxu0
        %1485 = vdwg.mxu0
        %v1486 = vrot.slane %v836, 3
        %v1487 = vlaneseq
        %v1488 = vshrl.u32 %v1487, 7
        %v1489 = vsub.s32 0, %v1488
        %v1490 = vrot.slane %v1486, %v1489
        %v1492 = vmul.f32 %v1483, %v1490
        %1493 = vadd.xlane.f32.xlu0 %v1492
        %v1494 = vpop.xlane.xlu0 %1493
        %v1495 = vrcp.pop %v1412
        %v1496 = vmul.f32 %v1494, %v1495
        %v1497 = vadd.f32 %v1332, %v1496
        %s1498 = sld [smem:[#allocation2]]
        %v1499 = vstv %s1498
        %v1500 = vadd.f32 %v1497, %v1499
        %v1501 = vmul.f32 %v294, %v1500
        %v1502 = vxor.u32 %v1501, 2147483648
        %v1503 = vmul.f32 %v1502, 1.442695
        %v1504 = vpow.pop %v1503
        %v1505 = vadd.f32 %v1504, 1.0
        %v1506 = vrcp.pop %v1505
        %v1507 = vmul.f32 1.0, %v1506
        %v1509 = vlaneseq
        %v1510 = vand.u32 %v1509, 127
        %v1511 = vlaneseq
        %v1512 = vshrl.u32 %v1511, 7
        %v1513 = vsub.s32 %v1510, %v1512
        %v1514 = vrot.slane %v1507, %v1513
        %vm1516 = vcmask 57344
        %1517 = vst.msk [vmem:[%s266] sm:$0x1] %vm1516, %v1514
        %s1518 = sand.u32 %s142, 1
        %s1519 = scalar_lea.sflag [#allocation5], %s1518
        %s1520 = sand.u32 %s142, 1
        %s1521 = scalar_lea.vmem [#allocation9], %s1520
        // Predicated region
        $region53: #{tpu_custom_call.1} parent=39 // pred_check
          %p1522 = pneg %p152
        $region54: #{tpu_custom_call.1} parent=39 // pred_check_branch
          %1524 = sbr.rel (%p1522) target = $region56
        $region55: #{tpu_custom_call.1} parent=39 // pred_region
          %s1526 = ssub.s32 16, 16
          %1527 = vsyncadd %s1519, %s1526
          %s1528 = smul.addr %s24, 16
          %s1529 = scalar_lea.hbm %s5, %s1528
          %s1531 = sshll.u32 %s1521, 4
          %s1532 = int_to_ptr.vmem [resolvable:$true] %s1531
          %1534 = dma.vmem_to_hbm [thread:$0]  %s1532, 16, %s1529, %s1519
        $region56: #{tpu_custom_call.1} parent=39 // pred_fallthru
          _
      $region40: #{tpu_custom_call.1} parent=5 // pred_fallthru
        _
      %p1535 = scmp.le.s32.totalorder 2, %s19
      // Predicated region
      $region57: #{tpu_custom_call.1} parent=5 // pred_check
        %p1536 = pneg %p1535
      $region58: #{tpu_custom_call.1} parent=5 // pred_check_branch
        %1538 = sbr.rel (%p1536) target = $region60
      $region59: #{tpu_custom_call.1} parent=5 // pred_region
        %s1539 = ssub.s32 %s19, 2
        // Predicated region
        $region61: #{tpu_custom_call.1} parent=59 // pred_check
          %p1540 = pneg %p158
        $region62: #{tpu_custom_call.1} parent=59 // pred_check_branch
          %1542 = sbr.rel (%p1540) target = $region64
        $region63: #{tpu_custom_call.1} parent=59 // pred_region
          %s1543 = sand.u32 %s143, 1
          %s1544 = scalar_lea.sflag [#allocation5], %s1543
          %s1545 = sand.u32 %s143, 1
          %s1546 = scalar_lea.vmem [#allocation9], %s1545
          %1547 = dma.done %s1544, 16
        $region64: #{tpu_custom_call.1} parent=59 // pred_fallthru
          _
      $region60: #{tpu_custom_call.1} parent=5 // pred_fallthru
        _
    $region6: #{tpu_custom_call.1} parent=1 // loop_footer
      %s23 = sadd.s32 1, %s19
    $region7: #{tpu_custom_call.1} parent=1 // loop_footer_branch
      %18 = sbr.rel target = $region3
    $region8: #{tpu_custom_call.1} parent=1 // loop_exit
      _
    %1548 = vsyncpa [#allocation4], 1
    %s1549 = scalar_lea.sflag [#allocation4], 1
    %1550 = vsyncpa %s1549, 1
    %1551 = vsyncpa [#allocation7], 1
    %1552 = vsyncpa [#allocation5], 1
    %s1553 = scalar_lea.sflag [#allocation5], 1
    %1554 = vsyncpa %s1553, 1

</llo_original>
